<compile_context>
chip_gen: v5e
topology: v5e:2x2
jax: 0.10.0
libtpu: 0.0.40
codegen_flags: <defaults>
</compile_context>

<pallas_src>
import functools

import jax
import jax.numpy as jnp
from jax.experimental import pallas as pl
from jax.experimental.pallas import tpu as pltpu

HIDDEN = 512
LANE = 128
SUBLANE = 8


def _round_up(x, m):
    return (x + m - 1) // m * m


def dqn_kernel(x_ref, w1_ref, b1_ref, w2_ref, b2_ref, w3_ref, b3_ref,
               w4_ref, b4_ref, o_ref):
    # Activations stay f32; cast to bf16 only at the MXU input so the f32
    # bias-add / ReLU path works on every chip (v5e VPU has no bf16).
    x = x_ref[...]

    # Layer 1: Linear(n_obs, 512) + ReLU  (Dropout = identity in eval)
    h = jnp.dot(x.astype(jnp.bfloat16), w1_ref[...],
                preferred_element_type=jnp.float32)
    h = jnp.maximum(h + b1_ref[...], 0.0)

    # Layer 2: Linear(512, 512) + ReLU
    h = jnp.dot(h.astype(jnp.bfloat16), w2_ref[...],
                preferred_element_type=jnp.float32)
    h = jnp.maximum(h + b2_ref[...], 0.0)

    # Layer 3: Linear(512, 512) + ReLU
    h = jnp.dot(h.astype(jnp.bfloat16), w3_ref[...],
                preferred_element_type=jnp.float32)
    h = jnp.maximum(h + b3_ref[...], 0.0)

    # Layer 4: Linear(512, n_actions_padded)  (no activation, lane-dense store)
    out = jnp.dot(h.astype(jnp.bfloat16), w4_ref[...],
                  preferred_element_type=jnp.float32)
    o_ref[...] = (out + b4_ref[...]).astype(o_ref.dtype)


def init_params(key, n_observations, n_actions, hidden=HIDDEN):
    """PyTorch-style uniform fan-in init, kept in f32 (reference precision)."""
    def linear(key, fan_in, fan_out):
        kw, kb = jax.random.split(key)
        bound = 1.0 / jnp.sqrt(fan_in)
        w = jax.random.uniform(kw, (fan_in, fan_out), jnp.float32, -bound, bound)
        b = jax.random.uniform(kb, (1, fan_out), jnp.float32, -bound, bound)
        return w, b

    k1, k2, k3, k4 = jax.random.split(key, 4)
    w1, b1 = linear(k1, n_observations, hidden)
    w2, b2 = linear(k2, hidden, hidden)
    w3, b3 = linear(k3, hidden, hidden)
    w4, b4 = linear(k4, hidden, n_actions)
    return {"w1": w1, "b1": b1, "w2": w2, "b2": b2,
            "w3": w3, "b3": b3, "w4": w4, "b4": b4}


def prepare_params(p, n_actions):
    """Cast weights to bf16 and pad layer-4 columns to a 128-lane multiple."""
    n_pad = _round_up(max(n_actions, 1), LANE)
    hidden = p["w4"].shape[0]
    w4 = jnp.zeros((hidden, n_pad), jnp.float32).at[:, :n_actions].set(p["w4"])
    b4 = jnp.zeros((1, n_pad), jnp.float32).at[:, :n_actions].set(p["b4"])
    return {
        "w1": p["w1"].astype(jnp.bfloat16), "b1": p["b1"],
        "w2": p["w2"].astype(jnp.bfloat16), "b2": p["b2"],
        "w3": p["w3"].astype(jnp.bfloat16), "b3": p["b3"],
        "w4": w4.astype(jnp.bfloat16), "b4": b4,
    }


@functools.partial(jax.jit, static_argnames=("n_actions", "block_b"))
def dqn_forward(x, prepped, n_actions, block_b=512):
    """x: (B, n_obs) f32.  prepped: output of prepare_params.  -> (B, n_actions)."""
    B, n_obs = x.shape
    n_pad = prepped["w4"].shape[1]

    # Batch tile: multiple of 8 sublanes, capped at block_b; pad B up to a
    # whole number of tiles so every vreg through the network is full.
    tb = min(block_b, _round_up(B, SUBLANE))
    b_pad = _round_up(B, tb)
    if b_pad != B:
        x = jnp.pad(x, ((0, b_pad - B), (0, 0)))

    grid = (b_pad // tb,)

    def resident(arr):
        # Weights/biases stay VMEM-resident across all batch tiles.
        return pl.BlockSpec(arr.shape, lambda i: (0, 0))

    out = pl.pallas_call(
        dqn_kernel,
        out_shape=jax.ShapeDtypeStruct((b_pad, n_pad), jnp.float32),
        grid=grid,
        in_specs=[
            pl.BlockSpec((tb, n_obs), lambda i: (i, 0)),
            resident(prepped["w1"]), resident(prepped["b1"]),
            resident(prepped["w2"]), resident(prepped["b2"]),
            resident(prepped["w3"]), resident(prepped["b3"]),
            resident(prepped["w4"]), resident(prepped["b4"]),
        ],
        out_specs=pl.BlockSpec((tb, n_pad), lambda i: (i, 0)),
        compiler_params=pltpu.CompilerParams(
            # batch tiles are independent -> shard across v7x's two TCs
            dimension_semantics=("parallel",),
            # explicit budget: ~1 MiB bf16 weights + double-buffered x/o tiles
            # + (tb, 512) f32 activations; 32 MiB has large headroom on every
            # chip (v7x scoped default) and overrides v5e's 16 MiB default.
            vmem_limit_bytes=32 * 1024 * 1024,
        ),
    )(x,
      prepped["w1"], prepped["b1"],
      prepped["w2"], prepped["b2"],
      prepped["w3"], prepped["b3"],
      prepped["w4"], prepped["b4"])

    return out[:B, :n_actions]


def dqn_reference(x, prepped, n_actions):
    """Pure-JAX reference of the same bf16-weight / f32-accumulate path."""
    def layer(h, w, b, relu):
        y = jnp.dot(h.astype(jnp.bfloat16), w,
                    preferred_element_type=jnp.float32) + b
        return jnp.maximum(y, 0.0) if relu else y

    h = layer(x, prepped["w1"], prepped["b1"], True)
    h = layer(h, prepped["w2"], prepped["b2"], True)
    h = layer(h, prepped["w3"], prepped["b3"], True)
    out = layer(h, prepped["w4"], prepped["b4"], False)
    return out[:, :n_actions]


if __name__ == "__main__":
    n_observations = 32
    n_actions = 4
    batch = 8

    key = jax.random.PRNGKey(0)
    k_params, k_x = jax.random.split(key)
    params_f32 = init_params(k_params, n_observations, n_actions)
    prepped = prepare_params(params_f32, n_actions)
    x = jax.random.normal(k_x, (batch, n_observations), jnp.float32)

    out = jax.block_until_ready(dqn_forward(x, prepped, n_actions))

    ref = dqn_reference(x, prepped, n_actions)
    assert out.shape == (batch, n_actions), out.shape
    assert jnp.allclose(out, ref, atol=1e-2, rtol=1e-2), "mismatch vs reference"

    print("KERNEL_OK")
</pallas_src>

<mosaic_0001>
module attributes {stable_mosaic.version = 11 : i64} {
  func.func @dqn_kernel(%arg0: i32, %arg1: memref<8x32xf32, #tpu.memory_space<vmem>>, %arg2: memref<32x512xbf16, #tpu.memory_space<vmem>>, %arg3: memref<1x512xf32, #tpu.memory_space<vmem>>, %arg4: memref<512x512xbf16, #tpu.memory_space<vmem>>, %arg5: memref<1x512xf32, #tpu.memory_space<vmem>>, %arg6: memref<512x512xbf16, #tpu.memory_space<vmem>>, %arg7: memref<1x512xf32, #tpu.memory_space<vmem>>, %arg8: memref<512x128xbf16, #tpu.memory_space<vmem>>, %arg9: memref<1x128xf32, #tpu.memory_space<vmem>>, %arg10: memref<8x128xf32, #tpu.memory_space<vmem>>) attributes {dimension_semantics = [#tpu.dimension_semantics<parallel>], iteration_bounds = array<i64: 1>, scalar_prefetch = 0 : i64, scratch_operands = 0 : i64, tpu.core_type = #tpu.core_type<tc>, window_params = [{transform_indices = @transform_0, window_bounds = array<i64: 8, 32>}, {pipeline_mode = #tpu.pipeline_mode<synchronous>, transform_indices = @transform_1, window_bounds = array<i64: 32, 512>}, {pipeline_mode = #tpu.pipeline_mode<synchronous>, transform_indices = @transform_2, window_bounds = array<i64: 1, 512>}, {pipeline_mode = #tpu.pipeline_mode<synchronous>, transform_indices = @transform_3, window_bounds = array<i64: 512, 512>}, {pipeline_mode = #tpu.pipeline_mode<synchronous>, transform_indices = @transform_4, window_bounds = array<i64: 1, 512>}, {pipeline_mode = #tpu.pipeline_mode<synchronous>, transform_indices = @transform_5, window_bounds = array<i64: 512, 512>}, {pipeline_mode = #tpu.pipeline_mode<synchronous>, transform_indices = @transform_6, window_bounds = array<i64: 1, 512>}, {pipeline_mode = #tpu.pipeline_mode<synchronous>, transform_indices = @transform_7, window_bounds = array<i64: 512, 128>}, {pipeline_mode = #tpu.pipeline_mode<synchronous>, transform_indices = @transform_8, window_bounds = array<i64: 1, 128>}, {transform_indices = @transform_9, window_bounds = array<i64: 8, 128>}]} {
    %c0 = arith.constant 0 : index
    %c0_0 = arith.constant 0 : index
    %0 = vector.load %arg1[%c0, %c0_0] : memref<8x32xf32, #tpu.memory_space<vmem>>, vector<8x32xf32>
    %1 = arith.truncf %0 : vector<8x32xf32> to vector<8x32xbf16>
    %c0_1 = arith.constant 0 : index
    %c0_2 = arith.constant 0 : index
    %2 = vector.load %arg2[%c0_1, %c0_2] : memref<32x512xbf16, #tpu.memory_space<vmem>>, vector<32x512xbf16>
    %cst = arith.constant dense<0.000000e+00> : vector<8x512xf32>
    %3 = tpu.matmul %1, %2, %cst {dimension_numbers = #tpu.dot_dimension_numbers<[1], [0], [0], [1], [0, 0, 1, 1], [], []>} : vector<8x32xbf16>, vector<32x512xbf16>, vector<8x512xf32> -> vector<8x512xf32>
    %c0_3 = arith.constant 0 : index
    %c0_4 = arith.constant 0 : index
    %4 = vector.load %arg3[%c0_3, %c0_4] : memref<1x512xf32, #tpu.memory_space<vmem>>, vector<1x512xf32>
    %5 = vector.broadcast %4 : vector<1x512xf32> to vector<8x512xf32>
    %6 = arith.addf %3, %5 : vector<8x512xf32>
    %cst_5 = arith.constant 0.000000e+00 : f32
    %7 = vector.broadcast %cst_5 : f32 to vector<8x512xf32>
    %8 = arith.maximumf %6, %7 : vector<8x512xf32>
    %9 = arith.truncf %8 : vector<8x512xf32> to vector<8x512xbf16>
    %c0_6 = arith.constant 0 : index
    %c0_7 = arith.constant 0 : index
    %10 = vector.load %arg4[%c0_6, %c0_7] : memref<512x512xbf16, #tpu.memory_space<vmem>>, vector<512x512xbf16>
    %cst_8 = arith.constant dense<0.000000e+00> : vector<8x512xf32>
    %11 = tpu.matmul %9, %10, %cst_8 {dimension_numbers = #tpu.dot_dimension_numbers<[1], [0], [0], [1], [0, 0, 1, 1], [], []>} : vector<8x512xbf16>, vector<512x512xbf16>, vector<8x512xf32> -> vector<8x512xf32>
    %c0_9 = arith.constant 0 : index
    %c0_10 = arith.constant 0 : index
    %12 = vector.load %arg5[%c0_9, %c0_10] : memref<1x512xf32, #tpu.memory_space<vmem>>, vector<1x512xf32>
    %13 = vector.broadcast %12 : vector<1x512xf32> to vector<8x512xf32>
    %14 = arith.addf %11, %13 : vector<8x512xf32>
    %cst_11 = arith.constant 0.000000e+00 : f32
    %15 = vector.broadcast %cst_11 : f32 to vector<8x512xf32>
    %16 = arith.maximumf %14, %15 : vector<8x512xf32>
    %17 = arith.truncf %16 : vector<8x512xf32> to vector<8x512xbf16>
    %c0_12 = arith.constant 0 : index
    %c0_13 = arith.constant 0 : index
    %18 = vector.load %arg6[%c0_12, %c0_13] : memref<512x512xbf16, #tpu.memory_space<vmem>>, vector<512x512xbf16>
    %cst_14 = arith.constant dense<0.000000e+00> : vector<8x512xf32>
    %19 = tpu.matmul %17, %18, %cst_14 {dimension_numbers = #tpu.dot_dimension_numbers<[1], [0], [0], [1], [0, 0, 1, 1], [], []>} : vector<8x512xbf16>, vector<512x512xbf16>, vector<8x512xf32> -> vector<8x512xf32>
    %c0_15 = arith.constant 0 : index
    %c0_16 = arith.constant 0 : index
    %20 = vector.load %arg7[%c0_15, %c0_16] : memref<1x512xf32, #tpu.memory_space<vmem>>, vector<1x512xf32>
    %21 = vector.broadcast %20 : vector<1x512xf32> to vector<8x512xf32>
    %22 = arith.addf %19, %21 : vector<8x512xf32>
    %cst_17 = arith.constant 0.000000e+00 : f32
    %23 = vector.broadcast %cst_17 : f32 to vector<8x512xf32>
    %24 = arith.maximumf %22, %23 : vector<8x512xf32>
    %25 = arith.truncf %24 : vector<8x512xf32> to vector<8x512xbf16>
    %c0_18 = arith.constant 0 : index
    %c0_19 = arith.constant 0 : index
    %26 = vector.load %arg8[%c0_18, %c0_19] : memref<512x128xbf16, #tpu.memory_space<vmem>>, vector<512x128xbf16>
    %cst_20 = arith.constant dense<0.000000e+00> : vector<8x128xf32>
    %27 = tpu.matmul %25, %26, %cst_20 {dimension_numbers = #tpu.dot_dimension_numbers<[1], [0], [0], [1], [0, 0, 1, 1], [], []>} : vector<8x512xbf16>, vector<512x128xbf16>, vector<8x128xf32> -> vector<8x128xf32>
    %c0_21 = arith.constant 0 : index
    %c0_22 = arith.constant 0 : index
    %28 = vector.load %arg9[%c0_21, %c0_22] : memref<1x128xf32, #tpu.memory_space<vmem>>, vector<1x128xf32>
    %29 = vector.broadcast %28 : vector<1x128xf32> to vector<8x128xf32>
    %30 = arith.addf %27, %29 : vector<8x128xf32>
    %c0_23 = arith.constant 0 : index
    %c0_24 = arith.constant 0 : index
    %31 = vector.load %arg10[%c0_23, %c0_24] : memref<8x128xf32, #tpu.memory_space<vmem>>, vector<8x128xf32>
    tpu.vector_store %arg10[%c0_23, %c0_24], %30 {strides = array<i32>} : memref<8x128xf32, #tpu.memory_space<vmem>>, vector<8x128xf32>,
    return
  }
  func.func @transform_0(%arg0: i32) -> (i32, i32) {
    %c0_i32 = arith.constant 0 : i32
    %c0_i32_0 = arith.constant 0 : i32
    return %arg0, %c0_i32 : i32, i32
  }
  func.func @transform_1(%arg0: i32) -> (i32, i32) {
    %c0_i32 = arith.constant 0 : i32
    %c0_i32_0 = arith.constant 0 : i32
    %c0_i32_1 = arith.constant 0 : i32
    return %c0_i32, %c0_i32_0 : i32, i32
  }
  func.func @transform_2(%arg0: i32) -> (i32, i32) {
    %c0_i32 = arith.constant 0 : i32
    %c0_i32_0 = arith.constant 0 : i32
    %c0_i32_1 = arith.constant 0 : i32
    return %c0_i32, %c0_i32_0 : i32, i32
  }
  func.func @transform_3(%arg0: i32) -> (i32, i32) {
    %c0_i32 = arith.constant 0 : i32
    %c0_i32_0 = arith.constant 0 : i32
    %c0_i32_1 = arith.constant 0 : i32
    return %c0_i32, %c0_i32_0 : i32, i32
  }
  func.func @transform_4(%arg0: i32) -> (i32, i32) {
    %c0_i32 = arith.constant 0 : i32
    %c0_i32_0 = arith.constant 0 : i32
    %c0_i32_1 = arith.constant 0 : i32
    return %c0_i32, %c0_i32_0 : i32, i32
  }
  func.func @transform_5(%arg0: i32) -> (i32, i32) {
    %c0_i32 = arith.constant 0 : i32
    %c0_i32_0 = arith.constant 0 : i32
    %c0_i32_1 = arith.constant 0 : i32
    return %c0_i32, %c0_i32_0 : i32, i32
  }
  func.func @transform_6(%arg0: i32) -> (i32, i32) {
    %c0_i32 = arith.constant 0 : i32
    %c0_i32_0 = arith.constant 0 : i32
    %c0_i32_1 = arith.constant 0 : i32
    return %c0_i32, %c0_i32_0 : i32, i32
  }
  func.func @transform_7(%arg0: i32) -> (i32, i32) {
    %c0_i32 = arith.constant 0 : i32
    %c0_i32_0 = arith.constant 0 : i32
    %c0_i32_1 = arith.constant 0 : i32
    return %c0_i32, %c0_i32_0 : i32, i32
  }
  func.func @transform_8(%arg0: i32) -> (i32, i32) {
    %c0_i32 = arith.constant 0 : i32
    %c0_i32_0 = arith.constant 0 : i32
    %c0_i32_1 = arith.constant 0 : i32
    return %c0_i32, %c0_i32_0 : i32, i32
  }
  func.func @transform_9(%arg0: i32) -> (i32, i32) {
    %c0_i32 = arith.constant 0 : i32
    %c0_i32_0 = arith.constant 0 : i32
    return %arg0, %c0_i32 : i32, i32
  }
}

</mosaic_0001>

<llo_original>
// kernel: dqn_forward.1
$region0: #{dqn_forward.1}
  #allocation0 [shape = 'u32[]', space=smem, size = 0x4, offset = 0x4, fixed_abs, tag = 'smem constant byte address 0x4 - core index']
  #allocation1 [shape = 'u32[72,128]{1,0:T(1,128)}', space=vmem, size = 0x9000, scoped, tag = 'internal scratch']
  %s0 = inlined_call_operand.hbm [shape: f32[8,32], index: 0, kind: input, shape index: {}]
  %s1 = inlined_call_operand.hbm [shape: bf16[32,512], index: 1, kind: input, shape index: {}]
  %s2 = inlined_call_operand.hbm [shape: f32[1,512], index: 2, kind: input, shape index: {}]
  %s3 = inlined_call_operand.hbm [shape: bf16[512,512], index: 3, kind: input, shape index: {}]
  %s4 = inlined_call_operand.hbm [shape: f32[1,512], index: 4, kind: input, shape index: {}]
  %s5 = inlined_call_operand.hbm [shape: bf16[512,512], index: 5, kind: input, shape index: {}]
  %s6 = inlined_call_operand.hbm [shape: f32[1,512], index: 6, kind: input, shape index: {}]
  %s7 = inlined_call_operand.hbm [shape: bf16[512,128], index: 7, kind: input, shape index: {}]
  %s8 = inlined_call_operand.vmem [shape: f32[1,128], index: 8, kind: input, shape index: {}]
  %s9 = inlined_call_operand.vmem [shape: f32[8,128], index: 9, kind: output, shape index: {}]
  %s10 = sld [smem:[#allocation0]]
  $region78: #{dqn_forward.1} parent=0
    _
  %s12 = ssub.s32 1, %s10
  %s13 = scalar_select 0, %s12, %s10
  $region1: #{dqn_forward.1} parent=0
    #allocation2 [shape = 'u8[4096]{0}', space=vmem, size = 0x1000, scoped, tag = 'input window, operand 0, single buffered']
    #allocation3 [shape = 's32[1]{0}', space=sflag, size = 0x4, scoped, tag = 'scoped memory for dqn_forward.1']
    #allocation4 [shape = 'u8[32768]{0}', space=vmem, size = 0x8000, scoped, tag = 'input window, operand 1, single buffered']
    #allocation5 [shape = 's32[1]{0}', space=sflag, size = 0x4, scoped, tag = 'scoped memory for dqn_forward.1']
    #allocation6 [shape = 'u8[2048]{0}', space=vmem, size = 0x800, scoped, tag = 'input window, operand 2, single buffered']
    #allocation7 [shape = 'u8[524288]{0}', space=vmem, size = 0x80000, scoped, tag = 'input window, operand 3, single buffered']
    #allocation8 [shape = 's32[1]{0}', space=sflag, size = 0x4, scoped, tag = 'scoped memory for dqn_forward.1']
    #allocation9 [shape = 'u8[2048]{0}', space=vmem, size = 0x800, scoped, tag = 'input window, operand 4, single buffered']
    #allocation10 [shape = 'u8[524288]{0}', space=vmem, size = 0x80000, scoped, tag = 'input window, operand 5, single buffered']
    #allocation11 [shape = 's32[1]{0}', space=sflag, size = 0x4, scoped, tag = 'scoped memory for dqn_forward.1']
    #allocation12 [shape = 'u8[2048]{0}', space=vmem, size = 0x800, scoped, tag = 'input window, operand 6, single buffered']
    #allocation13 [shape = 'u8[131072]{0}', space=vmem, size = 0x20000, scoped, tag = 'input window, operand 7, single buffered']
    #allocation14 [shape = 's32[1]{0}', space=sflag, size = 0x4, scoped, tag = 'scoped memory for dqn_forward.1']
    %14 = vsyncpa [#allocation3], 0
    %15 = vsyncpa [#allocation5], 0
    %16 = vsyncpa [#allocation8], 0
    %17 = vsyncpa [#allocation11], 0
    %18 = vsyncpa [#allocation14], 0
    // Predicated region
    $region2: #{dqn_forward.1} parent=1 // pred_check
      _
    $region3: #{dqn_forward.1} parent=1 // pred_check_branch
      %20 = sbr.rel (0) target = $region5
    $region4: #{dqn_forward.1} parent=1 // pred_region
      %22 = vsyncadd [#allocation3], 0
      %s24 = sshll.u32 %s0, 4
      %s25 = int_to_ptr.hbm [resolvable:$true] %s24
      %s26 = sshll.u32 [#allocation2], 4
      %s27 = int_to_ptr.vmem [resolvable:$true] %s26
      %29 = dma.hbm_to_vmem [thread:$0]  %s25, 128, %s27, [#allocation3]
    $region5: #{dqn_forward.1} parent=1 // pred_fallthru
      _
    // Predicated region
    $region6: #{dqn_forward.1} parent=1 // pred_check
      _
    $region7: #{dqn_forward.1} parent=1 // pred_check_branch
      %31 = sbr.rel (0) target = $region9
    $region8: #{dqn_forward.1} parent=1 // pred_region
      %33 = vsyncadd [#allocation5], 0
      %s34 = sshll.u32 %s1, 4
      %s35 = int_to_ptr.hbm [resolvable:$true] %s34
      %s36 = sshll.u32 [#allocation4], 4
      %s37 = int_to_ptr.vmem [resolvable:$true] %s36
      %42 = dma.hbm_to_vmem [thread:$0]  %s35, 1024, %s37, [#allocation5], 256, 256, 16
    $region9: #{dqn_forward.1} parent=1 // pred_fallthru
      _
    // Predicated region
    $region10: #{dqn_forward.1} parent=1 // pred_check
      _
    $region11: #{dqn_forward.1} parent=1 // pred_check_branch
      %44 = sbr.rel (0) target = $region13
    $region12: #{dqn_forward.1} parent=1 // pred_region
      %46 = vsyncadd [#allocation5], 0
      %s48 = sshll.u32 %s2, 4
      %s49 = int_to_ptr.hbm [resolvable:$true] %s48
      %s50 = sshll.u32 [#allocation6], 4
      %s51 = int_to_ptr.vmem [resolvable:$true] %s50
      %53 = dma.hbm_to_vmem [thread:$0]  %s49, 64, %s51, [#allocation5]
    $region13: #{dqn_forward.1} parent=1 // pred_fallthru
      _
    // Predicated region
    $region14: #{dqn_forward.1} parent=1 // pred_check
      _
    $region15: #{dqn_forward.1} parent=1 // pred_check_branch
      %55 = sbr.rel (0) target = $region17
    $region16: #{dqn_forward.1} parent=1 // pred_region
      %57 = vsyncadd [#allocation8], 0
      %s58 = sshll.u32 %s3, 4
      %s59 = int_to_ptr.hbm [resolvable:$true] %s58
      %s60 = sshll.u32 [#allocation7], 4
      %s61 = int_to_ptr.vmem [resolvable:$true] %s60
      %66 = dma.hbm_to_vmem [thread:$0]  %s59, 16384, %s61, [#allocation8], 256, 256, 16
    $region17: #{dqn_forward.1} parent=1 // pred_fallthru
      _
    // Predicated region
    $region18: #{dqn_forward.1} parent=1 // pred_check
      _
    $region19: #{dqn_forward.1} parent=1 // pred_check_branch
      %68 = sbr.rel (0) target = $region21
    $region20: #{dqn_forward.1} parent=1 // pred_region
      %70 = vsyncadd [#allocation8], 0
      %s72 = sshll.u32 %s4, 4
      %s73 = int_to_ptr.hbm [resolvable:$true] %s72
      %s74 = sshll.u32 [#allocation9], 4
      %s75 = int_to_ptr.vmem [resolvable:$true] %s74
      %77 = dma.hbm_to_vmem [thread:$0]  %s73, 64, %s75, [#allocation8]
    $region21: #{dqn_forward.1} parent=1 // pred_fallthru
      _
    // Predicated region
    $region22: #{dqn_forward.1} parent=1 // pred_check
      _
    $region23: #{dqn_forward.1} parent=1 // pred_check_branch
      %79 = sbr.rel (0) target = $region25
    $region24: #{dqn_forward.1} parent=1 // pred_region
      %81 = vsyncadd [#allocation11], 0
      %s82 = sshll.u32 %s5, 4
      %s83 = int_to_ptr.hbm [resolvable:$true] %s82
      %s84 = sshll.u32 [#allocation10], 4
      %s85 = int_to_ptr.vmem [resolvable:$true] %s84
      %90 = dma.hbm_to_vmem [thread:$0]  %s83, 16384, %s85, [#allocation11], 256, 256, 16
    $region25: #{dqn_forward.1} parent=1 // pred_fallthru
      _
    // Predicated region
    $region26: #{dqn_forward.1} parent=1 // pred_check
      _
    $region27: #{dqn_forward.1} parent=1 // pred_check_branch
      %92 = sbr.rel (0) target = $region29
    $region28: #{dqn_forward.1} parent=1 // pred_region
      %94 = vsyncadd [#allocation11], 0
      %s96 = sshll.u32 %s6, 4
      %s97 = int_to_ptr.hbm [resolvable:$true] %s96
      %s98 = sshll.u32 [#allocation12], 4
      %s99 = int_to_ptr.vmem [resolvable:$true] %s98
      %101 = dma.hbm_to_vmem [thread:$0]  %s97, 64, %s99, [#allocation11]
    $region29: #{dqn_forward.1} parent=1 // pred_fallthru
      _
    // Predicated region
    $region30: #{dqn_forward.1} parent=1 // pred_check
      _
    $region31: #{dqn_forward.1} parent=1 // pred_check_branch
      %103 = sbr.rel (0) target = $region33
    $region32: #{dqn_forward.1} parent=1 // pred_region
      %105 = vsyncadd [#allocation14], 0
      %s106 = sshll.u32 %s7, 4
      %s107 = int_to_ptr.hbm [resolvable:$true] %s106
      %s108 = sshll.u32 [#allocation13], 4
      %s109 = int_to_ptr.vmem [resolvable:$true] %s108
      %114 = dma.hbm_to_vmem [thread:$0]  %s107, 4096, %s109, [#allocation14], 64, 64, 4
    $region33: #{dqn_forward.1} parent=1 // pred_fallthru
      _
    // Predicated region
    $region34: #{dqn_forward.1} parent=1 // pred_check
      _
    $region35: #{dqn_forward.1} parent=1 // pred_check_branch
      %116 = sbr.rel (0) target = $region37
    $region36: #{dqn_forward.1} parent=1 // pred_region
      _
    $region37: #{dqn_forward.1} parent=1 // pred_fallthru
      _
    // Predicated region
    $region38: #{dqn_forward.1} parent=1 // pred_check
      _
    $region39: #{dqn_forward.1} parent=1 // pred_check_branch
      %118 = sbr.rel (0) target = $region41
    $region40: #{dqn_forward.1} parent=1 // pred_region
      %120 = dma.done [#allocation3], 128
    $region41: #{dqn_forward.1} parent=1 // pred_fallthru
      _
    // Predicated region
    $region42: #{dqn_forward.1} parent=1 // pred_check
      _
    $region43: #{dqn_forward.1} parent=1 // pred_check_branch
      %122 = sbr.rel (0) target = $region45
    $region44: #{dqn_forward.1} parent=1 // pred_region
      %124 = dma.done [#allocation5], 1024
    $region45: #{dqn_forward.1} parent=1 // pred_fallthru
      _
    // Predicated region
    $region46: #{dqn_forward.1} parent=1 // pred_check
      _
    $region47: #{dqn_forward.1} parent=1 // pred_check_branch
      %126 = sbr.rel (0) target = $region49
    $region48: #{dqn_forward.1} parent=1 // pred_region
      %128 = dma.done [#allocation5], 64
    $region49: #{dqn_forward.1} parent=1 // pred_fallthru
      _
    // Predicated region
    $region50: #{dqn_forward.1} parent=1 // pred_check
      _
    $region51: #{dqn_forward.1} parent=1 // pred_check_branch
      %130 = sbr.rel (0) target = $region53
    $region52: #{dqn_forward.1} parent=1 // pred_region
      %132 = dma.done [#allocation8], 16384
    $region53: #{dqn_forward.1} parent=1 // pred_fallthru
      _
    // Predicated region
    $region54: #{dqn_forward.1} parent=1 // pred_check
      _
    $region55: #{dqn_forward.1} parent=1 // pred_check_branch
      %134 = sbr.rel (0) target = $region57
    $region56: #{dqn_forward.1} parent=1 // pred_region
      %136 = dma.done [#allocation8], 64
    $region57: #{dqn_forward.1} parent=1 // pred_fallthru
      _
    // Predicated region
    $region58: #{dqn_forward.1} parent=1 // pred_check
      _
    $region59: #{dqn_forward.1} parent=1 // pred_check_branch
      %138 = sbr.rel (0) target = $region61
    $region60: #{dqn_forward.1} parent=1 // pred_region
      %140 = dma.done [#allocation11], 16384
    $region61: #{dqn_forward.1} parent=1 // pred_fallthru
      _
    // Predicated region
    $region62: #{dqn_forward.1} parent=1 // pred_check
      _
    $region63: #{dqn_forward.1} parent=1 // pred_check_branch
      %142 = sbr.rel (0) target = $region65
    $region64: #{dqn_forward.1} parent=1 // pred_region
      %144 = dma.done [#allocation11], 64
    $region65: #{dqn_forward.1} parent=1 // pred_fallthru
      _
    // Predicated region
    $region66: #{dqn_forward.1} parent=1 // pred_check
      _
    $region67: #{dqn_forward.1} parent=1 // pred_check_branch
      %146 = sbr.rel (0) target = $region69
    $region68: #{dqn_forward.1} parent=1 // pred_region
      %148 = dma.done [#allocation14], 4096
    $region69: #{dqn_forward.1} parent=1 // pred_fallthru
      _
    %v150 = vld [vmem:[#allocation2] sm:$0xff]
    %v151 = vpack.c.bf16 %v150, %v150
    %v152 = vld [vmem:[#allocation4] sm:$0xff]
    %v153 = vld [vmem:[#allocation4 + $0x8] sm:$0xff]
    %v154 = vld [vmem:[#allocation4 + $0x10] sm:$0xff]
    %v155 = vld [vmem:[#allocation4 + $0x18] sm:$0xff]
    %v156 = vld [vmem:[#allocation4 + $0x20] sm:$0xff]
    %v157 = vld [vmem:[#allocation4 + $0x28] sm:$0xff]
    %v158 = vld [vmem:[#allocation4 + $0x30] sm:$0xff]
    %v159 = vld [vmem:[#allocation4 + $0x38] sm:$0xff]
    %v160 = vld [vmem:[#allocation6] sm:$0xf]
    %v162 = vperm.slane %v160, 0
    %v163 = vperm.slane %v160, 1
    %v164 = vperm.slane %v160, 2
    %v165 = vperm.slane %v160, 3
    %v178 = vunpack.c.l.b16 %v152
    %v179 = vunpack.c.h.b16 %v152
    %v180 = vunpack.c.l.b16 %v153
    %v181 = vunpack.c.h.b16 %v153
    %v182 = vunpack.c.l.b16 %v154
    %v183 = vunpack.c.h.b16 %v154
    %v184 = vunpack.c.l.b16 %v155
    %v185 = vunpack.c.h.b16 %v155
    %v186 = vunpack.c.l.b16 %v156
    %v187 = vunpack.c.h.b16 %v156
    %v188 = vunpack.c.l.b16 %v157
    %v189 = vunpack.c.h.b16 %v157
    %v190 = vunpack.c.l.b16 %v158
    %v191 = vunpack.c.h.b16 %v158
    %v192 = vunpack.c.l.b16 %v159
    %v193 = vunpack.c.h.b16 %v159
    %v194 = vpack.c.b16 %v182, %v178
    %v195 = vpack.c.b16 %v183, %v179
    %v196 = vpack.c.b16 %v184, %v180
    %v197 = vpack.c.b16 %v185, %v181
    %v198 = vpack.c.b16 %v190, %v186
    %v199 = vpack.c.b16 %v191, %v187
    %v200 = vpack.c.b16 %v192, %v188
    %v201 = vpack.c.b16 %v193, %v189
    %vm210 = vcmask 261120
    %v212 = vsel %vm210, %v151, 0
    %214 = vmatpush.bf16.msra.mxu0 0
    %215 = vmatpush.bf16.msra.mxu0 0
    %216 = vmatpush.bf16.msra.mxu0 0
    %217 = vmatpush.bf16.msra.mxu0 0
    %218 = vmatpush.bf16.msra.mxu0 0
    %219 = vmatpush.bf16.msra.mxu0 0
    %220 = vmatpush.bf16.msra.mxu0 %v198
    %221 = vmatpush.bf16.msra.mxu0 %v194
    %222 = vmatmul.bf16.gmra.mxu0 %v212
    %v223 = vpop.f32.mrf.mxu0
    %v224 = vadd.f32 %v162, %v223
    %v225 = vpop.f32.mrf.mxu0
    %226 = vdwg.mxu0
    %227 = vmatpush.bf16.msra.mxu0 0
    %228 = vmatpush.bf16.msra.mxu0 0
    %229 = vmatpush.bf16.msra.mxu0 0
    %230 = vmatpush.bf16.msra.mxu0 0
    %231 = vmatpush.bf16.msra.mxu0 0
    %232 = vmatpush.bf16.msra.mxu0 0
    %233 = vmatpush.bf16.msra.mxu0 %v199
    %234 = vmatpush.bf16.msra.mxu0 %v195
    %235 = vmatmul.bf16.gmra.mxu0 %v212
    %v236 = vpop.f32.mrf.mxu0
    %v237 = vadd.f32 %v163, %v236
    %v238 = vpop.f32.mrf.mxu0
    %239 = vdwg.mxu0
    %240 = vmatpush.bf16.msra.mxu0 0
    %241 = vmatpush.bf16.msra.mxu0 0
    %242 = vmatpush.bf16.msra.mxu0 0
    %243 = vmatpush.bf16.msra.mxu0 0
    %244 = vmatpush.bf16.msra.mxu0 0
    %245 = vmatpush.bf16.msra.mxu0 0
    %246 = vmatpush.bf16.msra.mxu0 %v200
    %247 = vmatpush.bf16.msra.mxu0 %v196
    %248 = vmatmul.bf16.gmra.mxu0 %v212
    %v249 = vpop.f32.mrf.mxu0
    %v250 = vadd.f32 %v164, %v249
    %v251 = vpop.f32.mrf.mxu0
    %252 = vdwg.mxu0
    %253 = vmatpush.bf16.msra.mxu0 0
    %254 = vmatpush.bf16.msra.mxu0 0
    %255 = vmatpush.bf16.msra.mxu0 0
    %256 = vmatpush.bf16.msra.mxu0 0
    %257 = vmatpush.bf16.msra.mxu0 0
    %258 = vmatpush.bf16.msra.mxu0 0
    %259 = vmatpush.bf16.msra.mxu0 %v201
    %260 = vmatpush.bf16.msra.mxu0 %v197
    %261 = vmatmul.bf16.gmra.mxu0 %v212
    %v262 = vpop.f32.mrf.mxu0
    %v263 = vadd.f32 %v165, %v262
    %v264 = vpop.f32.mrf.mxu0
    %265 = vdwg.mxu0
    %v266 = vmax.f32 %v224, 0.0
    %v267 = vmax.f32 %v237, 0.0
    %v268 = vmax.f32 %v250, 0.0
    %v269 = vmax.f32 %v263, 0.0
    %v270 = vpack.c.bf16 %v266, %v266
    %v271 = vpack.c.bf16 %v267, %v267
    %v272 = vpack.c.bf16 %v268, %v268
    %v273 = vpack.c.bf16 %v269, %v269
    %v274 = vld [vmem:[#allocation7] sm:$0xff]
    %v275 = vld [vmem:[#allocation7 + $0x8] sm:$0xff]
    %v276 = vld [vmem:[#allocation7 + $0x10] sm:$0xff]
    %v277 = vld [vmem:[#allocation7 + $0x18] sm:$0xff]
    %v278 = vld [vmem:[#allocation7 + $0x20] sm:$0xff]
    %v279 = vld [vmem:[#allocation7 + $0x28] sm:$0xff]
    %v280 = vld [vmem:[#allocation7 + $0x30] sm:$0xff]
    %v281 = vld [vmem:[#allocation7 + $0x38] sm:$0xff]
    %v282 = vld [vmem:[#allocation7 + $0x40] sm:$0xff]
    %v283 = vld [vmem:[#allocation7 + $0x48] sm:$0xff]
    %v284 = vld [vmem:[#allocation7 + $0x50] sm:$0xff]
    %v285 = vld [vmem:[#allocation7 + $0x58] sm:$0xff]
    %v286 = vld [vmem:[#allocation7 + $0x60] sm:$0xff]
    %v287 = vld [vmem:[#allocation7 + $0x68] sm:$0xff]
    %v288 = vld [vmem:[#allocation7 + $0x70] sm:$0xff]
    %v289 = vld [vmem:[#allocation7 + $0x78] sm:$0xff]
    %v290 = vld [vmem:[#allocation7 + $0x80] sm:$0xff]
    %v291 = vld [vmem:[#allocation7 + $0x88] sm:$0xff]
    %v292 = vld [vmem:[#allocation7 + $0x90] sm:$0xff]
    %v293 = vld [vmem:[#allocation7 + $0x98] sm:$0xff]
    %v294 = vld [vmem:[#allocation7 + $0xa0] sm:$0xff]
    %v295 = vld [vmem:[#allocation7 + $0xa8] sm:$0xff]
    %v296 = vld [vmem:[#allocation7 + $0xb0] sm:$0xff]
    %v297 = vld [vmem:[#allocation7 + $0xb8] sm:$0xff]
    %v298 = vld [vmem:[#allocation7 + $0xc0] sm:$0xff]
    %v299 = vld [vmem:[#allocation7 + $0xc8] sm:$0xff]
    %v300 = vld [vmem:[#allocation7 + $0xd0] sm:$0xff]
    %v301 = vld [vmem:[#allocation7 + $0xd8] sm:$0xff]
    %v302 = vld [vmem:[#allocation7 + $0xe0] sm:$0xff]
    %v303 = vld [vmem:[#allocation7 + $0xe8] sm:$0xff]
    %v304 = vld [vmem:[#allocation7 + $0xf0] sm:$0xff]
    %v305 = vld [vmem:[#allocation7 + $0xf8] sm:$0xff]
    %v306 = vld [vmem:[#allocation7 + $0x100] sm:$0xff]
    %v307 = vld [vmem:[#allocation7 + $0x108] sm:$0xff]
    %v308 = vld [vmem:[#allocation7 + $0x110] sm:$0xff]
    %v309 = vld [vmem:[#allocation7 + $0x118] sm:$0xff]
    %v310 = vld [vmem:[#allocation7 + $0x120] sm:$0xff]
    %v311 = vld [vmem:[#allocation7 + $0x128] sm:$0xff]
    %v312 = vld [vmem:[#allocation7 + $0x130] sm:$0xff]
    %v313 = vld [vmem:[#allocation7 + $0x138] sm:$0xff]
    %v314 = vld [vmem:[#allocation7 + $0x140] sm:$0xff]
    %v315 = vld [vmem:[#allocation7 + $0x148] sm:$0xff]
    %v316 = vld [vmem:[#allocation7 + $0x150] sm:$0xff]
    %v317 = vld [vmem:[#allocation7 + $0x158] sm:$0xff]
    %v318 = vld [vmem:[#allocation7 + $0x160] sm:$0xff]
    %v319 = vld [vmem:[#allocation7 + $0x168] sm:$0xff]
    %v320 = vld [vmem:[#allocation7 + $0x170] sm:$0xff]
    %v321 = vld [vmem:[#allocation7 + $0x178] sm:$0xff]
    %v322 = vld [vmem:[#allocation7 + $0x180] sm:$0xff]
    %v323 = vld [vmem:[#allocation7 + $0x188] sm:$0xff]
    %v324 = vld [vmem:[#allocation7 + $0x190] sm:$0xff]
    %v325 = vld [vmem:[#allocation7 + $0x198] sm:$0xff]
    %v326 = vld [vmem:[#allocation7 + $0x1a0] sm:$0xff]
    %v327 = vld [vmem:[#allocation7 + $0x1a8] sm:$0xff]
    %v328 = vld [vmem:[#allocation7 + $0x1b0] sm:$0xff]
    %v329 = vld [vmem:[#allocation7 + $0x1b8] sm:$0xff]
    %v330 = vld [vmem:[#allocation7 + $0x1c0] sm:$0xff]
    %v331 = vld [vmem:[#allocation7 + $0x1c8] sm:$0xff]
    %v332 = vld [vmem:[#allocation7 + $0x1d0] sm:$0xff]
    %v333 = vld [vmem:[#allocation7 + $0x1d8] sm:$0xff]
    %v334 = vld [vmem:[#allocation7 + $0x1e0] sm:$0xff]
    %v335 = vld [vmem:[#allocation7 + $0x1e8] sm:$0xff]
    %v336 = vld [vmem:[#allocation7 + $0x1f0] sm:$0xff]
    %v337 = vld [vmem:[#allocation7 + $0x1f8] sm:$0xff]
    %v338 = vld [vmem:[#allocation7 + $0x200] sm:$0xff]
    %v339 = vld [vmem:[#allocation7 + $0x208] sm:$0xff]
    %v340 = vld [vmem:[#allocation7 + $0x210] sm:$0xff]
    %v341 = vld [vmem:[#allocation7 + $0x218] sm:$0xff]
    %v342 = vld [vmem:[#allocation7 + $0x220] sm:$0xff]
    %v343 = vld [vmem:[#allocation7 + $0x228] sm:$0xff]
    %v344 = vld [vmem:[#allocation7 + $0x230] sm:$0xff]
    %v345 = vld [vmem:[#allocation7 + $0x238] sm:$0xff]
    %v346 = vld [vmem:[#allocation7 + $0x240] sm:$0xff]
    %v347 = vld [vmem:[#allocation7 + $0x248] sm:$0xff]
    %v348 = vld [vmem:[#allocation7 + $0x250] sm:$0xff]
    %v349 = vld [vmem:[#allocation7 + $0x258] sm:$0xff]
    %v350 = vld [vmem:[#allocation7 + $0x260] sm:$0xff]
    %v351 = vld [vmem:[#allocation7 + $0x268] sm:$0xff]
    %v352 = vld [vmem:[#allocation7 + $0x270] sm:$0xff]
    %v353 = vld [vmem:[#allocation7 + $0x278] sm:$0xff]
    %v354 = vld [vmem:[#allocation7 + $0x280] sm:$0xff]
    %v355 = vld [vmem:[#allocation7 + $0x288] sm:$0xff]
    %v356 = vld [vmem:[#allocation7 + $0x290] sm:$0xff]
    %v357 = vld [vmem:[#allocation7 + $0x298] sm:$0xff]
    %v358 = vld [vmem:[#allocation7 + $0x2a0] sm:$0xff]
    %v359 = vld [vmem:[#allocation7 + $0x2a8] sm:$0xff]
    %v360 = vld [vmem:[#allocation7 + $0x2b0] sm:$0xff]
    %v361 = vld [vmem:[#allocation7 + $0x2b8] sm:$0xff]
    %v362 = vld [vmem:[#allocation7 + $0x2c0] sm:$0xff]
    %v363 = vld [vmem:[#allocation7 + $0x2c8] sm:$0xff]
    %v364 = vld [vmem:[#allocation7 + $0x2d0] sm:$0xff]
    %v365 = vld [vmem:[#allocation7 + $0x2d8] sm:$0xff]
    %v366 = vld [vmem:[#allocation7 + $0x2e0] sm:$0xff]
    %v367 = vld [vmem:[#allocation7 + $0x2e8] sm:$0xff]
    %v368 = vld [vmem:[#allocation7 + $0x2f0] sm:$0xff]
    %v369 = vld [vmem:[#allocation7 + $0x2f8] sm:$0xff]
    %v370 = vld [vmem:[#allocation7 + $0x300] sm:$0xff]
    %v371 = vld [vmem:[#allocation7 + $0x308] sm:$0xff]
    %v372 = vld [vmem:[#allocation7 + $0x310] sm:$0xff]
    %v373 = vld [vmem:[#allocation7 + $0x318] sm:$0xff]
    %v374 = vld [vmem:[#allocation7 + $0x320] sm:$0xff]
    %v375 = vld [vmem:[#allocation7 + $0x328] sm:$0xff]
    %v376 = vld [vmem:[#allocation7 + $0x330] sm:$0xff]
    %v377 = vld [vmem:[#allocation7 + $0x338] sm:$0xff]
    %v378 = vld [vmem:[#allocation7 + $0x340] sm:$0xff]
    %v379 = vld [vmem:[#allocation7 + $0x348] sm:$0xff]
    %v380 = vld [vmem:[#allocation7 + $0x350] sm:$0xff]
    %v381 = vld [vmem:[#allocation7 + $0x358] sm:$0xff]
    %v382 = vld [vmem:[#allocation7 + $0x360] sm:$0xff]
    %v383 = vld [vmem:[#allocation7 + $0x368] sm:$0xff]
    %v384 = vld [vmem:[#allocation7 + $0x370] sm:$0xff]
    %v385 = vld [vmem:[#allocation7 + $0x378] sm:$0xff]
    %v386 = vld [vmem:[#allocation7 + $0x380] sm:$0xff]
    %v387 = vld [vmem:[#allocation7 + $0x388] sm:$0xff]
    %v388 = vld [vmem:[#allocation7 + $0x390] sm:$0xff]
    %v389 = vld [vmem:[#allocation7 + $0x398] sm:$0xff]
    %v390 = vld [vmem:[#allocation7 + $0x3a0] sm:$0xff]
    %v391 = vld [vmem:[#allocation7 + $0x3a8] sm:$0xff]
    %v392 = vld [vmem:[#allocation7 + $0x3b0] sm:$0xff]
    %v393 = vld [vmem:[#allocation7 + $0x3b8] sm:$0xff]
    %v394 = vld [vmem:[#allocation7 + $0x3c0] sm:$0xff]
    %v395 = vld [vmem:[#allocation7 + $0x3c8] sm:$0xff]
    %v396 = vld [vmem:[#allocation7 + $0x3d0] sm:$0xff]
    %v397 = vld [vmem:[#allocation7 + $0x3d8] sm:$0xff]
    %v398 = vld [vmem:[#allocation7 + $0x3e0] sm:$0xff]
    %v399 = vld [vmem:[#allocation7 + $0x3e8] sm:$0xff]
    %v400 = vld [vmem:[#allocation7 + $0x3f0] sm:$0xff]
    %v401 = vld [vmem:[#allocation7 + $0x3f8] sm:$0xff]
    %v402 = vld [vmem:[#allocation9] sm:$0xf]
    %v404 = vperm.slane %v402, 0
    %v405 = vperm.slane %v402, 1
    %v406 = vperm.slane %v402, 2
    %v407 = vperm.slane %v402, 3
    %v540 = vunpack.c.l.b16 %v274
    %v541 = vunpack.c.h.b16 %v274
    %v542 = vunpack.c.l.b16 %v275
    %v543 = vunpack.c.h.b16 %v275
    %v544 = vunpack.c.l.b16 %v276
    %v545 = vunpack.c.h.b16 %v276
    %v546 = vunpack.c.l.b16 %v277
    %v547 = vunpack.c.h.b16 %v277
    %v548 = vunpack.c.l.b16 %v278
    %v549 = vunpack.c.h.b16 %v278
    %v550 = vunpack.c.l.b16 %v279
    %v551 = vunpack.c.h.b16 %v279
    %v552 = vunpack.c.l.b16 %v280
    %v553 = vunpack.c.h.b16 %v280
    %v554 = vunpack.c.l.b16 %v281
    %v555 = vunpack.c.h.b16 %v281
    %v556 = vunpack.c.l.b16 %v282
    %v557 = vunpack.c.h.b16 %v282
    %v558 = vunpack.c.l.b16 %v283
    %v559 = vunpack.c.h.b16 %v283
    %v560 = vunpack.c.l.b16 %v284
    %v561 = vunpack.c.h.b16 %v284
    %v562 = vunpack.c.l.b16 %v285
    %v563 = vunpack.c.h.b16 %v285
    %v564 = vunpack.c.l.b16 %v286
    %v565 = vunpack.c.h.b16 %v286
    %v566 = vunpack.c.l.b16 %v287
    %v567 = vunpack.c.h.b16 %v287
    %v568 = vunpack.c.l.b16 %v288
    %v569 = vunpack.c.h.b16 %v288
    %v570 = vunpack.c.l.b16 %v289
    %v571 = vunpack.c.h.b16 %v289
    %v572 = vunpack.c.l.b16 %v290
    %v573 = vunpack.c.h.b16 %v290
    %v574 = vunpack.c.l.b16 %v291
    %v575 = vunpack.c.h.b16 %v291
    %v576 = vunpack.c.l.b16 %v292
    %v577 = vunpack.c.h.b16 %v292
    %v578 = vunpack.c.l.b16 %v293
    %v579 = vunpack.c.h.b16 %v293
    %v580 = vunpack.c.l.b16 %v294
    %v581 = vunpack.c.h.b16 %v294
    %v582 = vunpack.c.l.b16 %v295
    %v583 = vunpack.c.h.b16 %v295
    %v584 = vunpack.c.l.b16 %v296
    %v585 = vunpack.c.h.b16 %v296
    %v586 = vunpack.c.l.b16 %v297
    %v587 = vunpack.c.h.b16 %v297
    %v588 = vunpack.c.l.b16 %v298
    %v589 = vunpack.c.h.b16 %v298
    %v590 = vunpack.c.l.b16 %v299
    %v591 = vunpack.c.h.b16 %v299
    %v592 = vunpack.c.l.b16 %v300
    %v593 = vunpack.c.h.b16 %v300
    %v594 = vunpack.c.l.b16 %v301
    %v595 = vunpack.c.h.b16 %v301
    %v596 = vunpack.c.l.b16 %v302
    %v597 = vunpack.c.h.b16 %v302
    %v598 = vunpack.c.l.b16 %v303
    %v599 = vunpack.c.h.b16 %v303
    %v600 = vunpack.c.l.b16 %v304
    %v601 = vunpack.c.h.b16 %v304
    %v602 = vunpack.c.l.b16 %v305
    %v603 = vunpack.c.h.b16 %v305
    %v604 = vunpack.c.l.b16 %v306
    %v605 = vunpack.c.h.b16 %v306
    %v606 = vunpack.c.l.b16 %v307
    %v607 = vunpack.c.h.b16 %v307
    %v608 = vunpack.c.l.b16 %v308
    %v609 = vunpack.c.h.b16 %v308
    %v610 = vunpack.c.l.b16 %v309
    %v611 = vunpack.c.h.b16 %v309
    %v612 = vunpack.c.l.b16 %v310
    %v613 = vunpack.c.h.b16 %v310
    %v614 = vunpack.c.l.b16 %v311
    %v615 = vunpack.c.h.b16 %v311
    %v616 = vunpack.c.l.b16 %v312
    %v617 = vunpack.c.h.b16 %v312
    %v618 = vunpack.c.l.b16 %v313
    %v619 = vunpack.c.h.b16 %v313
    %v620 = vunpack.c.l.b16 %v314
    %v621 = vunpack.c.h.b16 %v314
    %v622 = vunpack.c.l.b16 %v315
    %v623 = vunpack.c.h.b16 %v315
    %v624 = vunpack.c.l.b16 %v316
    %v625 = vunpack.c.h.b16 %v316
    %v626 = vunpack.c.l.b16 %v317
    %v627 = vunpack.c.h.b16 %v317
    %v628 = vunpack.c.l.b16 %v318
    %v629 = vunpack.c.h.b16 %v318
    %v630 = vunpack.c.l.b16 %v319
    %v631 = vunpack.c.h.b16 %v319
    %v632 = vunpack.c.l.b16 %v320
    %v633 = vunpack.c.h.b16 %v320
    %v634 = vunpack.c.l.b16 %v321
    %v635 = vunpack.c.h.b16 %v321
    %v636 = vunpack.c.l.b16 %v322
    %v637 = vunpack.c.h.b16 %v322
    %v638 = vunpack.c.l.b16 %v323
    %v639 = vunpack.c.h.b16 %v323
    %v640 = vunpack.c.l.b16 %v324
    %v641 = vunpack.c.h.b16 %v324
    %v642 = vunpack.c.l.b16 %v325
    %v643 = vunpack.c.h.b16 %v325
    %v644 = vunpack.c.l.b16 %v326
    %v645 = vunpack.c.h.b16 %v326
    %v646 = vunpack.c.l.b16 %v327
    %v647 = vunpack.c.h.b16 %v327
    %v648 = vunpack.c.l.b16 %v328
    %v649 = vunpack.c.h.b16 %v328
    %v650 = vunpack.c.l.b16 %v329
    %v651 = vunpack.c.h.b16 %v329
    %v652 = vunpack.c.l.b16 %v330
    %v653 = vunpack.c.h.b16 %v330
    %v654 = vunpack.c.l.b16 %v331
    %v655 = vunpack.c.h.b16 %v331
    %v656 = vunpack.c.l.b16 %v332
    %v657 = vunpack.c.h.b16 %v332
    %v658 = vunpack.c.l.b16 %v333
    %v659 = vunpack.c.h.b16 %v333
    %v660 = vunpack.c.l.b16 %v334
    %v661 = vunpack.c.h.b16 %v334
    %v662 = vunpack.c.l.b16 %v335
    %v663 = vunpack.c.h.b16 %v335
    %v664 = vunpack.c.l.b16 %v336
    %v665 = vunpack.c.h.b16 %v336
    %v666 = vunpack.c.l.b16 %v337
    %v667 = vunpack.c.h.b16 %v337
    %v668 = vunpack.c.l.b16 %v338
    %v669 = vunpack.c.h.b16 %v338
    %v670 = vunpack.c.l.b16 %v339
    %v671 = vunpack.c.h.b16 %v339
    %v672 = vunpack.c.l.b16 %v340
    %v673 = vunpack.c.h.b16 %v340
    %v674 = vunpack.c.l.b16 %v341
    %v675 = vunpack.c.h.b16 %v341
    %v676 = vunpack.c.l.b16 %v342
    %v677 = vunpack.c.h.b16 %v342
    %v678 = vunpack.c.l.b16 %v343
    %v679 = vunpack.c.h.b16 %v343
    %v680 = vunpack.c.l.b16 %v344
    %v681 = vunpack.c.h.b16 %v344
    %v682 = vunpack.c.l.b16 %v345
    %v683 = vunpack.c.h.b16 %v345
    %v684 = vunpack.c.l.b16 %v346
    %v685 = vunpack.c.h.b16 %v346
    %v686 = vunpack.c.l.b16 %v347
    %v687 = vunpack.c.h.b16 %v347
    %v688 = vunpack.c.l.b16 %v348
    %v689 = vunpack.c.h.b16 %v348
    %v690 = vunpack.c.l.b16 %v349
    %v691 = vunpack.c.h.b16 %v349
    %v692 = vunpack.c.l.b16 %v350
    %v693 = vunpack.c.h.b16 %v350
    %v694 = vunpack.c.l.b16 %v351
    %v695 = vunpack.c.h.b16 %v351
    %v696 = vunpack.c.l.b16 %v352
    %v697 = vunpack.c.h.b16 %v352
    %v698 = vunpack.c.l.b16 %v353
    %v699 = vunpack.c.h.b16 %v353
    %v700 = vunpack.c.l.b16 %v354
    %v701 = vunpack.c.h.b16 %v354
    %v702 = vunpack.c.l.b16 %v355
    %v703 = vunpack.c.h.b16 %v355
    %v704 = vunpack.c.l.b16 %v356
    %v705 = vunpack.c.h.b16 %v356
    %v706 = vunpack.c.l.b16 %v357
    %v707 = vunpack.c.h.b16 %v357
    %v708 = vunpack.c.l.b16 %v358
    %v709 = vunpack.c.h.b16 %v358
    %v710 = vunpack.c.l.b16 %v359
    %v711 = vunpack.c.h.b16 %v359
    %v712 = vunpack.c.l.b16 %v360
    %v713 = vunpack.c.h.b16 %v360
    %v714 = vunpack.c.l.b16 %v361
    %v715 = vunpack.c.h.b16 %v361
    %v716 = vunpack.c.l.b16 %v362
    %v717 = vunpack.c.h.b16 %v362
    %v718 = vunpack.c.l.b16 %v363
    %v719 = vunpack.c.h.b16 %v363
    %v720 = vunpack.c.l.b16 %v364
    %v721 = vunpack.c.h.b16 %v364
    %v722 = vunpack.c.l.b16 %v365
    %v723 = vunpack.c.h.b16 %v365
    %v724 = vunpack.c.l.b16 %v366
    %v725 = vunpack.c.h.b16 %v366
    %v726 = vunpack.c.l.b16 %v367
    %v727 = vunpack.c.h.b16 %v367
    %v728 = vunpack.c.l.b16 %v368
    %v729 = vunpack.c.h.b16 %v368
    %v730 = vunpack.c.l.b16 %v369
    %v731 = vunpack.c.h.b16 %v369
    %v732 = vunpack.c.l.b16 %v370
    %v733 = vunpack.c.h.b16 %v370
    %v734 = vunpack.c.l.b16 %v371
    %v735 = vunpack.c.h.b16 %v371
    %v736 = vunpack.c.l.b16 %v372
    %v737 = vunpack.c.h.b16 %v372
    %v738 = vunpack.c.l.b16 %v373
    %v739 = vunpack.c.h.b16 %v373
    %v740 = vunpack.c.l.b16 %v374
    %v741 = vunpack.c.h.b16 %v374
    %v742 = vunpack.c.l.b16 %v375
    %v743 = vunpack.c.h.b16 %v375
    %v744 = vunpack.c.l.b16 %v376
    %v745 = vunpack.c.h.b16 %v376
    %v746 = vunpack.c.l.b16 %v377
    %v747 = vunpack.c.h.b16 %v377
    %v748 = vunpack.c.l.b16 %v378
    %v749 = vunpack.c.h.b16 %v378
    %v750 = vunpack.c.l.b16 %v379
    %v751 = vunpack.c.h.b16 %v379
    %v752 = vunpack.c.l.b16 %v380
    %v753 = vunpack.c.h.b16 %v380
    %v754 = vunpack.c.l.b16 %v381
    %v755 = vunpack.c.h.b16 %v381
    %v756 = vunpack.c.l.b16 %v382
    %v757 = vunpack.c.h.b16 %v382
    %v758 = vunpack.c.l.b16 %v383
    %v759 = vunpack.c.h.b16 %v383
    %v760 = vunpack.c.l.b16 %v384
    %v761 = vunpack.c.h.b16 %v384
    %v762 = vunpack.c.l.b16 %v385
    %v763 = vunpack.c.h.b16 %v385
    %v764 = vunpack.c.l.b16 %v386
    %v765 = vunpack.c.h.b16 %v386
    %v766 = vunpack.c.l.b16 %v387
    %v767 = vunpack.c.h.b16 %v387
    %v768 = vunpack.c.l.b16 %v388
    %v769 = vunpack.c.h.b16 %v388
    %v770 = vunpack.c.l.b16 %v389
    %v771 = vunpack.c.h.b16 %v389
    %v772 = vunpack.c.l.b16 %v390
    %v773 = vunpack.c.h.b16 %v390
    %v774 = vunpack.c.l.b16 %v391
    %v775 = vunpack.c.h.b16 %v391
    %v776 = vunpack.c.l.b16 %v392
    %v777 = vunpack.c.h.b16 %v392
    %v778 = vunpack.c.l.b16 %v393
    %v779 = vunpack.c.h.b16 %v393
    %v780 = vunpack.c.l.b16 %v394
    %v781 = vunpack.c.h.b16 %v394
    %v782 = vunpack.c.l.b16 %v395
    %v783 = vunpack.c.h.b16 %v395
    %v784 = vunpack.c.l.b16 %v396
    %v785 = vunpack.c.h.b16 %v396
    %v786 = vunpack.c.l.b16 %v397
    %v787 = vunpack.c.h.b16 %v397
    %v788 = vunpack.c.l.b16 %v398
    %v789 = vunpack.c.h.b16 %v398
    %v790 = vunpack.c.l.b16 %v399
    %v791 = vunpack.c.h.b16 %v399
    %v792 = vunpack.c.l.b16 %v400
    %v793 = vunpack.c.h.b16 %v400
    %v794 = vunpack.c.l.b16 %v401
    %v795 = vunpack.c.h.b16 %v401
    %v796 = vpack.c.b16 %v544, %v540
    %v797 = vpack.c.b16 %v545, %v541
    %v798 = vpack.c.b16 %v546, %v542
    %v799 = vpack.c.b16 %v547, %v543
    %v800 = vpack.c.b16 %v552, %v548
    %v801 = vpack.c.b16 %v553, %v549
    %v802 = vpack.c.b16 %v554, %v550
    %v803 = vpack.c.b16 %v555, %v551
    %v804 = vpack.c.b16 %v560, %v556
    %v805 = vpack.c.b16 %v561, %v557
    %v806 = vpack.c.b16 %v562, %v558
    %v807 = vpack.c.b16 %v563, %v559
    %v808 = vpack.c.b16 %v568, %v564
    %v809 = vpack.c.b16 %v569, %v565
    %v810 = vpack.c.b16 %v570, %v566
    %v811 = vpack.c.b16 %v571, %v567
    %v812 = vpack.c.b16 %v576, %v572
    %v813 = vpack.c.b16 %v577, %v573
    %v814 = vpack.c.b16 %v578, %v574
    %v815 = vpack.c.b16 %v579, %v575
    %v816 = vpack.c.b16 %v584, %v580
    %v817 = vpack.c.b16 %v585, %v581
    %v818 = vpack.c.b16 %v586, %v582
    %v819 = vpack.c.b16 %v587, %v583
    %v820 = vpack.c.b16 %v592, %v588
    %v821 = vpack.c.b16 %v593, %v589
    %v822 = vpack.c.b16 %v594, %v590
    %v823 = vpack.c.b16 %v595, %v591
    %v824 = vpack.c.b16 %v600, %v596
    %v825 = vpack.c.b16 %v601, %v597
    %v826 = vpack.c.b16 %v602, %v598
    %v827 = vpack.c.b16 %v603, %v599
    %v828 = vpack.c.b16 %v608, %v604
    %v829 = vpack.c.b16 %v609, %v605
    %v830 = vpack.c.b16 %v610, %v606
    %v831 = vpack.c.b16 %v611, %v607
    %v832 = vpack.c.b16 %v616, %v612
    %v833 = vpack.c.b16 %v617, %v613
    %v834 = vpack.c.b16 %v618, %v614
    %v835 = vpack.c.b16 %v619, %v615
    %v836 = vpack.c.b16 %v624, %v620
    %v837 = vpack.c.b16 %v625, %v621
    %v838 = vpack.c.b16 %v626, %v622
    %v839 = vpack.c.b16 %v627, %v623
    %v840 = vpack.c.b16 %v632, %v628
    %v841 = vpack.c.b16 %v633, %v629
    %v842 = vpack.c.b16 %v634, %v630
    %v843 = vpack.c.b16 %v635, %v631
    %v844 = vpack.c.b16 %v640, %v636
    %v845 = vpack.c.b16 %v641, %v637
    %v846 = vpack.c.b16 %v642, %v638
    %v847 = vpack.c.b16 %v643, %v639
    %v848 = vpack.c.b16 %v648, %v644
    %v849 = vpack.c.b16 %v649, %v645
    %v850 = vpack.c.b16 %v650, %v646
    %v851 = vpack.c.b16 %v651, %v647
    %v852 = vpack.c.b16 %v656, %v652
    %v853 = vpack.c.b16 %v657, %v653
    %v854 = vpack.c.b16 %v658, %v654
    %v855 = vpack.c.b16 %v659, %v655
    %v856 = vpack.c.b16 %v664, %v660
    %v857 = vpack.c.b16 %v665, %v661
    %v858 = vpack.c.b16 %v666, %v662
    %v859 = vpack.c.b16 %v667, %v663
    %v860 = vpack.c.b16 %v672, %v668
    %v861 = vpack.c.b16 %v673, %v669
    %v862 = vpack.c.b16 %v674, %v670
    %v863 = vpack.c.b16 %v675, %v671
    %v864 = vpack.c.b16 %v680, %v676
    %v865 = vpack.c.b16 %v681, %v677
    %v866 = vpack.c.b16 %v682, %v678
    %v867 = vpack.c.b16 %v683, %v679
    %v868 = vpack.c.b16 %v688, %v684
    %v869 = vpack.c.b16 %v689, %v685
    %v870 = vpack.c.b16 %v690, %v686
    %v871 = vpack.c.b16 %v691, %v687
    %v872 = vpack.c.b16 %v696, %v692
    %v873 = vpack.c.b16 %v697, %v693
    %v874 = vpack.c.b16 %v698, %v694
    %v875 = vpack.c.b16 %v699, %v695
    %v876 = vpack.c.b16 %v704, %v700
    %v877 = vpack.c.b16 %v705, %v701
    %v878 = vpack.c.b16 %v706, %v702
    %v879 = vpack.c.b16 %v707, %v703
    %v880 = vpack.c.b16 %v712, %v708
    %v881 = vpack.c.b16 %v713, %v709
    %v882 = vpack.c.b16 %v714, %v710
    %v883 = vpack.c.b16 %v715, %v711
    %v884 = vpack.c.b16 %v720, %v716
    %v885 = vpack.c.b16 %v721, %v717
    %v886 = vpack.c.b16 %v722, %v718
    %v887 = vpack.c.b16 %v723, %v719
    %v888 = vpack.c.b16 %v728, %v724
    %v889 = vpack.c.b16 %v729, %v725
    %v890 = vpack.c.b16 %v730, %v726
    %v891 = vpack.c.b16 %v731, %v727
    %v892 = vpack.c.b16 %v736, %v732
    %v893 = vpack.c.b16 %v737, %v733
    %v894 = vpack.c.b16 %v738, %v734
    %v895 = vpack.c.b16 %v739, %v735
    %v896 = vpack.c.b16 %v744, %v740
    %v897 = vpack.c.b16 %v745, %v741
    %v898 = vpack.c.b16 %v746, %v742
    %v899 = vpack.c.b16 %v747, %v743
    %v900 = vpack.c.b16 %v752, %v748
    %v901 = vpack.c.b16 %v753, %v749
    %v902 = vpack.c.b16 %v754, %v750
    %v903 = vpack.c.b16 %v755, %v751
    %v904 = vpack.c.b16 %v760, %v756
    %v905 = vpack.c.b16 %v761, %v757
    %v906 = vpack.c.b16 %v762, %v758
    %v907 = vpack.c.b16 %v763, %v759
    %v908 = vpack.c.b16 %v768, %v764
    %v909 = vpack.c.b16 %v769, %v765
    %v910 = vpack.c.b16 %v770, %v766
    %v911 = vpack.c.b16 %v771, %v767
    %v912 = vpack.c.b16 %v776, %v772
    %v913 = vpack.c.b16 %v777, %v773
    %v914 = vpack.c.b16 %v778, %v774
    %v915 = vpack.c.b16 %v779, %v775
    %v916 = vpack.c.b16 %v784, %v780
    %v917 = vpack.c.b16 %v785, %v781
    %v918 = vpack.c.b16 %v786, %v782
    %v919 = vpack.c.b16 %v787, %v783
    %v920 = vpack.c.b16 %v792, %v788
    %v921 = vpack.c.b16 %v793, %v789
    %v922 = vpack.c.b16 %v794, %v790
    %v923 = vpack.c.b16 %v795, %v791
    %1052 = vmatpush.bf16.msra.mxu0 %v824
    %1053 = vmatpush.bf16.msra.mxu0 %v820
    %1054 = vmatpush.bf16.msra.mxu0 %v816
    %1055 = vmatpush.bf16.msra.mxu0 %v812
    %1056 = vmatpush.bf16.msra.mxu0 %v808
    %1057 = vmatpush.bf16.msra.mxu0 %v804
    %1058 = vmatpush.bf16.msra.mxu0 %v800
    %1059 = vmatpush.bf16.msra.mxu0 %v796
    %1060 = vmatmul.bf16.gmra.mxu0 %v270
    %v1061 = vpop.f32.mrf.mxu0
    %v1062 = vadd.f32 %v404, %v1061
    %v1063 = vpop.f32.mrf.mxu0
    %1064 = vdwg.mxu0
    %1065 = vmatpush.bf16.msra.mxu0 %v856
    %1066 = vmatpush.bf16.msra.mxu0 %v852
    %1067 = vmatpush.bf16.msra.mxu0 %v848
    %1068 = vmatpush.bf16.msra.mxu0 %v844
    %1069 = vmatpush.bf16.msra.mxu0 %v840
    %1070 = vmatpush.bf16.msra.mxu0 %v836
    %1071 = vmatpush.bf16.msra.mxu0 %v832
    %1072 = vmatpush.bf16.msra.mxu0 %v828
    %1073 = vmatmul.bf16.gmra.mxu0 %v271
    %v1074 = vpop.f32.mrf.mxu0
    %v1075 = vadd.f32 %v1062, %v1074
    %v1076 = vpop.f32.mrf.mxu0
    %1077 = vdwg.mxu0
    %1078 = vmatpush.bf16.msra.mxu0 %v888
    %1079 = vmatpush.bf16.msra.mxu0 %v884
    %1080 = vmatpush.bf16.msra.mxu0 %v880
    %1081 = vmatpush.bf16.msra.mxu0 %v876
    %1082 = vmatpush.bf16.msra.mxu0 %v872
    %1083 = vmatpush.bf16.msra.mxu0 %v868
    %1084 = vmatpush.bf16.msra.mxu0 %v864
    %1085 = vmatpush.bf16.msra.mxu0 %v860
    %1086 = vmatmul.bf16.gmra.mxu0 %v272
    %v1087 = vpop.f32.mrf.mxu0
    %v1088 = vadd.f32 %v1075, %v1087
    %v1089 = vpop.f32.mrf.mxu0
    %1090 = vdwg.mxu0
    %1091 = vmatpush.bf16.msra.mxu0 %v920
    %1092 = vmatpush.bf16.msra.mxu0 %v916
    %1093 = vmatpush.bf16.msra.mxu0 %v912
    %1094 = vmatpush.bf16.msra.mxu0 %v908
    %1095 = vmatpush.bf16.msra.mxu0 %v904
    %1096 = vmatpush.bf16.msra.mxu0 %v900
    %1097 = vmatpush.bf16.msra.mxu0 %v896
    %1098 = vmatpush.bf16.msra.mxu0 %v892
    %1099 = vmatmul.bf16.gmra.mxu0 %v273
    %v1100 = vpop.f32.mrf.mxu0
    %v1101 = vadd.f32 %v1088, %v1100
    %v1102 = vpop.f32.mrf.mxu0
    %1103 = vdwg.mxu0
    %1104 = vmatpush.bf16.msra.mxu0 %v825
    %1105 = vmatpush.bf16.msra.mxu0 %v821
    %1106 = vmatpush.bf16.msra.mxu0 %v817
    %1107 = vmatpush.bf16.msra.mxu0 %v813
    %1108 = vmatpush.bf16.msra.mxu0 %v809
    %1109 = vmatpush.bf16.msra.mxu0 %v805
    %1110 = vmatpush.bf16.msra.mxu0 %v801
    %1111 = vmatpush.bf16.msra.mxu0 %v797
    %1112 = vmatmul.bf16.gmra.mxu0 %v270
    %v1113 = vpop.f32.mrf.mxu0
    %v1114 = vadd.f32 %v405, %v1113
    %v1115 = vpop.f32.mrf.mxu0
    %1116 = vdwg.mxu0
    %1117 = vmatpush.bf16.msra.mxu0 %v857
    %1118 = vmatpush.bf16.msra.mxu0 %v853
    %1119 = vmatpush.bf16.msra.mxu0 %v849
    %1120 = vmatpush.bf16.msra.mxu0 %v845
    %1121 = vmatpush.bf16.msra.mxu0 %v841
    %1122 = vmatpush.bf16.msra.mxu0 %v837
    %1123 = vmatpush.bf16.msra.mxu0 %v833
    %1124 = vmatpush.bf16.msra.mxu0 %v829
    %1125 = vmatmul.bf16.gmra.mxu0 %v271
    %v1126 = vpop.f32.mrf.mxu0
    %v1127 = vadd.f32 %v1114, %v1126
    %v1128 = vpop.f32.mrf.mxu0
    %1129 = vdwg.mxu0
    %1130 = vmatpush.bf16.msra.mxu0 %v889
    %1131 = vmatpush.bf16.msra.mxu0 %v885
    %1132 = vmatpush.bf16.msra.mxu0 %v881
    %1133 = vmatpush.bf16.msra.mxu0 %v877
    %1134 = vmatpush.bf16.msra.mxu0 %v873
    %1135 = vmatpush.bf16.msra.mxu0 %v869
    %1136 = vmatpush.bf16.msra.mxu0 %v865
    %1137 = vmatpush.bf16.msra.mxu0 %v861
    %1138 = vmatmul.bf16.gmra.mxu0 %v272
    %v1139 = vpop.f32.mrf.mxu0
    %v1140 = vadd.f32 %v1127, %v1139
    %v1141 = vpop.f32.mrf.mxu0
    %1142 = vdwg.mxu0
    %1143 = vmatpush.bf16.msra.mxu0 %v921
    %1144 = vmatpush.bf16.msra.mxu0 %v917
    %1145 = vmatpush.bf16.msra.mxu0 %v913
    %1146 = vmatpush.bf16.msra.mxu0 %v909
    %1147 = vmatpush.bf16.msra.mxu0 %v905
    %1148 = vmatpush.bf16.msra.mxu0 %v901
    %1149 = vmatpush.bf16.msra.mxu0 %v897
    %1150 = vmatpush.bf16.msra.mxu0 %v893
    %1151 = vmatmul.bf16.gmra.mxu0 %v273
    %v1152 = vpop.f32.mrf.mxu0
    %v1153 = vadd.f32 %v1140, %v1152
    %v1154 = vpop.f32.mrf.mxu0
    %1155 = vdwg.mxu0
    %1156 = vmatpush.bf16.msra.mxu0 %v826
    %1157 = vmatpush.bf16.msra.mxu0 %v822
    %1158 = vmatpush.bf16.msra.mxu0 %v818
    %1159 = vmatpush.bf16.msra.mxu0 %v814
    %1160 = vmatpush.bf16.msra.mxu0 %v810
    %1161 = vmatpush.bf16.msra.mxu0 %v806
    %1162 = vmatpush.bf16.msra.mxu0 %v802
    %1163 = vmatpush.bf16.msra.mxu0 %v798
    %1164 = vmatmul.bf16.gmra.mxu0 %v270
    %v1165 = vpop.f32.mrf.mxu0
    %v1166 = vadd.f32 %v406, %v1165
    %v1167 = vpop.f32.mrf.mxu0
    %1168 = vdwg.mxu0
    %1169 = vmatpush.bf16.msra.mxu0 %v858
    %1170 = vmatpush.bf16.msra.mxu0 %v854
    %1171 = vmatpush.bf16.msra.mxu0 %v850
    %1172 = vmatpush.bf16.msra.mxu0 %v846
    %1173 = vmatpush.bf16.msra.mxu0 %v842
    %1174 = vmatpush.bf16.msra.mxu0 %v838
    %1175 = vmatpush.bf16.msra.mxu0 %v834
    %1176 = vmatpush.bf16.msra.mxu0 %v830
    %1177 = vmatmul.bf16.gmra.mxu0 %v271
    %v1178 = vpop.f32.mrf.mxu0
    %v1179 = vadd.f32 %v1166, %v1178
    %v1180 = vpop.f32.mrf.mxu0
    %1181 = vdwg.mxu0
    %1182 = vmatpush.bf16.msra.mxu0 %v890
    %1183 = vmatpush.bf16.msra.mxu0 %v886
    %1184 = vmatpush.bf16.msra.mxu0 %v882
    %1185 = vmatpush.bf16.msra.mxu0 %v878
    %1186 = vmatpush.bf16.msra.mxu0 %v874
    %1187 = vmatpush.bf16.msra.mxu0 %v870
    %1188 = vmatpush.bf16.msra.mxu0 %v866
    %1189 = vmatpush.bf16.msra.mxu0 %v862
    %1190 = vmatmul.bf16.gmra.mxu0 %v272
    %v1191 = vpop.f32.mrf.mxu0
    %v1192 = vadd.f32 %v1179, %v1191
    %v1193 = vpop.f32.mrf.mxu0
    %1194 = vdwg.mxu0
    %1195 = vmatpush.bf16.msra.mxu0 %v922
    %1196 = vmatpush.bf16.msra.mxu0 %v918
    %1197 = vmatpush.bf16.msra.mxu0 %v914
    %1198 = vmatpush.bf16.msra.mxu0 %v910
    %1199 = vmatpush.bf16.msra.mxu0 %v906
    %1200 = vmatpush.bf16.msra.mxu0 %v902
    %1201 = vmatpush.bf16.msra.mxu0 %v898
    %1202 = vmatpush.bf16.msra.mxu0 %v894
    %1203 = vmatmul.bf16.gmra.mxu0 %v273
    %v1204 = vpop.f32.mrf.mxu0
    %v1205 = vadd.f32 %v1192, %v1204
    %v1206 = vpop.f32.mrf.mxu0
    %1207 = vdwg.mxu0
    %1208 = vmatpush.bf16.msra.mxu0 %v827
    %1209 = vmatpush.bf16.msra.mxu0 %v823
    %1210 = vmatpush.bf16.msra.mxu0 %v819
    %1211 = vmatpush.bf16.msra.mxu0 %v815
    %1212 = vmatpush.bf16.msra.mxu0 %v811
    %1213 = vmatpush.bf16.msra.mxu0 %v807
    %1214 = vmatpush.bf16.msra.mxu0 %v803
    %1215 = vmatpush.bf16.msra.mxu0 %v799
    %1216 = vmatmul.bf16.gmra.mxu0 %v270
    %v1217 = vpop.f32.mrf.mxu0
    %v1218 = vadd.f32 %v407, %v1217
    %v1219 = vpop.f32.mrf.mxu0
    %1220 = vdwg.mxu0
    %1221 = vmatpush.bf16.msra.mxu0 %v859
    %1222 = vmatpush.bf16.msra.mxu0 %v855
    %1223 = vmatpush.bf16.msra.mxu0 %v851
    %1224 = vmatpush.bf16.msra.mxu0 %v847
    %1225 = vmatpush.bf16.msra.mxu0 %v843
    %1226 = vmatpush.bf16.msra.mxu0 %v839
    %1227 = vmatpush.bf16.msra.mxu0 %v835
    %1228 = vmatpush.bf16.msra.mxu0 %v831
    %1229 = vmatmul.bf16.gmra.mxu0 %v271
    %v1230 = vpop.f32.mrf.mxu0
    %v1231 = vadd.f32 %v1218, %v1230
    %v1232 = vpop.f32.mrf.mxu0
    %1233 = vdwg.mxu0
    %1234 = vmatpush.bf16.msra.mxu0 %v891
    %1235 = vmatpush.bf16.msra.mxu0 %v887
    %1236 = vmatpush.bf16.msra.mxu0 %v883
    %1237 = vmatpush.bf16.msra.mxu0 %v879
    %1238 = vmatpush.bf16.msra.mxu0 %v875
    %1239 = vmatpush.bf16.msra.mxu0 %v871
    %1240 = vmatpush.bf16.msra.mxu0 %v867
    %1241 = vmatpush.bf16.msra.mxu0 %v863
    %1242 = vmatmul.bf16.gmra.mxu0 %v272
    %v1243 = vpop.f32.mrf.mxu0
    %v1244 = vadd.f32 %v1231, %v1243
    %v1245 = vpop.f32.mrf.mxu0
    %1246 = vdwg.mxu0
    %1247 = vmatpush.bf16.msra.mxu0 %v923
    %1248 = vmatpush.bf16.msra.mxu0 %v919
    %1249 = vmatpush.bf16.msra.mxu0 %v915
    %1250 = vmatpush.bf16.msra.mxu0 %v911
    %1251 = vmatpush.bf16.msra.mxu0 %v907
    %1252 = vmatpush.bf16.msra.mxu0 %v903
    %1253 = vmatpush.bf16.msra.mxu0 %v899
    %1254 = vmatpush.bf16.msra.mxu0 %v895
    %1255 = vmatmul.bf16.gmra.mxu0 %v273
    %v1256 = vpop.f32.mrf.mxu0
    %v1257 = vadd.f32 %v1244, %v1256
    %v1258 = vpop.f32.mrf.mxu0
    %1259 = vdwg.mxu0
    %v1260 = vmax.f32 %v1101, 0.0
    %v1261 = vmax.f32 %v1153, 0.0
    %v1262 = vmax.f32 %v1205, 0.0
    %v1263 = vmax.f32 %v1257, 0.0
    %v1264 = vpack.c.bf16 %v1260, %v1260
    %v1265 = vpack.c.bf16 %v1261, %v1261
    %v1266 = vpack.c.bf16 %v1262, %v1262
    %v1267 = vpack.c.bf16 %v1263, %v1263
    %v1268 = vld [vmem:[#allocation10] sm:$0xff]
    %v1269 = vld [vmem:[#allocation10 + $0x8] sm:$0xff]
    %v1270 = vld [vmem:[#allocation10 + $0x10] sm:$0xff]
    %v1271 = vld [vmem:[#allocation10 + $0x18] sm:$0xff]
    %v1272 = vld [vmem:[#allocation10 + $0x20] sm:$0xff]
    %v1273 = vld [vmem:[#allocation10 + $0x28] sm:$0xff]
    %v1274 = vld [vmem:[#allocation10 + $0x30] sm:$0xff]
    %v1275 = vld [vmem:[#allocation10 + $0x38] sm:$0xff]
    %v1276 = vld [vmem:[#allocation10 + $0x40] sm:$0xff]
    %v1277 = vld [vmem:[#allocation10 + $0x48] sm:$0xff]
    %v1278 = vld [vmem:[#allocation10 + $0x50] sm:$0xff]
    %v1279 = vld [vmem:[#allocation10 + $0x58] sm:$0xff]
    %v1280 = vld [vmem:[#allocation10 + $0x60] sm:$0xff]
    %v1281 = vld [vmem:[#allocation10 + $0x68] sm:$0xff]
    %v1282 = vld [vmem:[#allocation10 + $0x70] sm:$0xff]
    %v1283 = vld [vmem:[#allocation10 + $0x78] sm:$0xff]
    %v1284 = vld [vmem:[#allocation10 + $0x80] sm:$0xff]
    %v1285 = vld [vmem:[#allocation10 + $0x88] sm:$0xff]
    %v1286 = vld [vmem:[#allocation10 + $0x90] sm:$0xff]
    %v1287 = vld [vmem:[#allocation10 + $0x98] sm:$0xff]
    %v1288 = vld [vmem:[#allocation10 + $0xa0] sm:$0xff]
    %v1289 = vld [vmem:[#allocation10 + $0xa8] sm:$0xff]
    %v1290 = vld [vmem:[#allocation10 + $0xb0] sm:$0xff]
    %v1291 = vld [vmem:[#allocation10 + $0xb8] sm:$0xff]
    %v1292 = vld [vmem:[#allocation10 + $0xc0] sm:$0xff]
    %v1293 = vld [vmem:[#allocation10 + $0xc8] sm:$0xff]
    %v1294 = vld [vmem:[#allocation10 + $0xd0] sm:$0xff]
    %v1295 = vld [vmem:[#allocation10 + $0xd8] sm:$0xff]
    %v1296 = vld [vmem:[#allocation10 + $0xe0] sm:$0xff]
    %v1297 = vld [vmem:[#allocation10 + $0xe8] sm:$0xff]
    %v1298 = vld [vmem:[#allocation10 + $0xf0] sm:$0xff]
    %v1299 = vld [vmem:[#allocation10 + $0xf8] sm:$0xff]
    %v1300 = vld [vmem:[#allocation10 + $0x100] sm:$0xff]
    %v1301 = vld [vmem:[#allocation10 + $0x108] sm:$0xff]
    %v1302 = vld [vmem:[#allocation10 + $0x110] sm:$0xff]
    %v1303 = vld [vmem:[#allocation10 + $0x118] sm:$0xff]
    %v1304 = vld [vmem:[#allocation10 + $0x120] sm:$0xff]
    %v1305 = vld [vmem:[#allocation10 + $0x128] sm:$0xff]
    %v1306 = vld [vmem:[#allocation10 + $0x130] sm:$0xff]
    %v1307 = vld [vmem:[#allocation10 + $0x138] sm:$0xff]
    %v1308 = vld [vmem:[#allocation10 + $0x140] sm:$0xff]
    %v1309 = vld [vmem:[#allocation10 + $0x148] sm:$0xff]
    %v1310 = vld [vmem:[#allocation10 + $0x150] sm:$0xff]
    %v1311 = vld [vmem:[#allocation10 + $0x158] sm:$0xff]
    %v1312 = vld [vmem:[#allocation10 + $0x160] sm:$0xff]
    %v1313 = vld [vmem:[#allocation10 + $0x168] sm:$0xff]
    %v1314 = vld [vmem:[#allocation10 + $0x170] sm:$0xff]
    %v1315 = vld [vmem:[#allocation10 + $0x178] sm:$0xff]
    %v1316 = vld [vmem:[#allocation10 + $0x180] sm:$0xff]
    %v1317 = vld [vmem:[#allocation10 + $0x188] sm:$0xff]
    %v1318 = vld [vmem:[#allocation10 + $0x190] sm:$0xff]
    %v1319 = vld [vmem:[#allocation10 + $0x198] sm:$0xff]
    %v1320 = vld [vmem:[#allocation10 + $0x1a0] sm:$0xff]
    %v1321 = vld [vmem:[#allocation10 + $0x1a8] sm:$0xff]
    %v1322 = vld [vmem:[#allocation10 + $0x1b0] sm:$0xff]
    %v1323 = vld [vmem:[#allocation10 + $0x1b8] sm:$0xff]
    %v1324 = vld [vmem:[#allocation10 + $0x1c0] sm:$0xff]
    %v1325 = vld [vmem:[#allocation10 + $0x1c8] sm:$0xff]
    %v1326 = vld [vmem:[#allocation10 + $0x1d0] sm:$0xff]
    %v1327 = vld [vmem:[#allocation10 + $0x1d8] sm:$0xff]
    %v1328 = vld [vmem:[#allocation10 + $0x1e0] sm:$0xff]
    %v1329 = vld [vmem:[#allocation10 + $0x1e8] sm:$0xff]
    %v1330 = vld [vmem:[#allocation10 + $0x1f0] sm:$0xff]
    %v1331 = vld [vmem:[#allocation10 + $0x1f8] sm:$0xff]
    %v1332 = vld [vmem:[#allocation10 + $0x200] sm:$0xff]
    %v1333 = vld [vmem:[#allocation10 + $0x208] sm:$0xff]
    %v1334 = vld [vmem:[#allocation10 + $0x210] sm:$0xff]
    %v1335 = vld [vmem:[#allocation10 + $0x218] sm:$0xff]
    %v1336 = vld [vmem:[#allocation10 + $0x220] sm:$0xff]
    %v1337 = vld [vmem:[#allocation10 + $0x228] sm:$0xff]
    %v1338 = vld [vmem:[#allocation10 + $0x230] sm:$0xff]
    %v1339 = vld [vmem:[#allocation10 + $0x238] sm:$0xff]
    %v1340 = vld [vmem:[#allocation10 + $0x240] sm:$0xff]
    %v1341 = vld [vmem:[#allocation10 + $0x248] sm:$0xff]
    %v1342 = vld [vmem:[#allocation10 + $0x250] sm:$0xff]
    %v1343 = vld [vmem:[#allocation10 + $0x258] sm:$0xff]
    %v1344 = vld [vmem:[#allocation10 + $0x260] sm:$0xff]
    %v1345 = vld [vmem:[#allocation10 + $0x268] sm:$0xff]
    %v1346 = vld [vmem:[#allocation10 + $0x270] sm:$0xff]
    %v1347 = vld [vmem:[#allocation10 + $0x278] sm:$0xff]
    %v1348 = vld [vmem:[#allocation10 + $0x280] sm:$0xff]
    %v1349 = vld [vmem:[#allocation10 + $0x288] sm:$0xff]
    %v1350 = vld [vmem:[#allocation10 + $0x290] sm:$0xff]
    %v1351 = vld [vmem:[#allocation10 + $0x298] sm:$0xff]
    %v1352 = vld [vmem:[#allocation10 + $0x2a0] sm:$0xff]
    %v1353 = vld [vmem:[#allocation10 + $0x2a8] sm:$0xff]
    %v1354 = vld [vmem:[#allocation10 + $0x2b0] sm:$0xff]
    %v1355 = vld [vmem:[#allocation10 + $0x2b8] sm:$0xff]
    %v1356 = vld [vmem:[#allocation10 + $0x2c0] sm:$0xff]
    %v1357 = vld [vmem:[#allocation10 + $0x2c8] sm:$0xff]
    %v1358 = vld [vmem:[#allocation10 + $0x2d0] sm:$0xff]
    %v1359 = vld [vmem:[#allocation10 + $0x2d8] sm:$0xff]
    %v1360 = vld [vmem:[#allocation10 + $0x2e0] sm:$0xff]
    %v1361 = vld [vmem:[#allocation10 + $0x2e8] sm:$0xff]
    %v1362 = vld [vmem:[#allocation10 + $0x2f0] sm:$0xff]
    %v1363 = vld [vmem:[#allocation10 + $0x2f8] sm:$0xff]
    %v1364 = vld [vmem:[#allocation10 + $0x300] sm:$0xff]
    %v1365 = vld [vmem:[#allocation10 + $0x308] sm:$0xff]
    %v1366 = vld [vmem:[#allocation10 + $0x310] sm:$0xff]
    %v1367 = vld [vmem:[#allocation10 + $0x318] sm:$0xff]
    %v1368 = vld [vmem:[#allocation10 + $0x320] sm:$0xff]
    %v1369 = vld [vmem:[#allocation10 + $0x328] sm:$0xff]
    %v1370 = vld [vmem:[#allocation10 + $0x330] sm:$0xff]
    %v1371 = vld [vmem:[#allocation10 + $0x338] sm:$0xff]
    %v1372 = vld [vmem:[#allocation10 + $0x340] sm:$0xff]
    %v1373 = vld [vmem:[#allocation10 + $0x348] sm:$0xff]
    %v1374 = vld [vmem:[#allocation10 + $0x350] sm:$0xff]
    %v1375 = vld [vmem:[#allocation10 + $0x358] sm:$0xff]
    %v1376 = vld [vmem:[#allocation10 + $0x360] sm:$0xff]
    %v1377 = vld [vmem:[#allocation10 + $0x368] sm:$0xff]
    %v1378 = vld [vmem:[#allocation10 + $0x370] sm:$0xff]
    %v1379 = vld [vmem:[#allocation10 + $0x378] sm:$0xff]
    %v1380 = vld [vmem:[#allocation10 + $0x380] sm:$0xff]
    %v1381 = vld [vmem:[#allocation10 + $0x388] sm:$0xff]
    %v1382 = vld [vmem:[#allocation10 + $0x390] sm:$0xff]
    %v1383 = vld [vmem:[#allocation10 + $0x398] sm:$0xff]
    %v1384 = vld [vmem:[#allocation10 + $0x3a0] sm:$0xff]
    %v1385 = vld [vmem:[#allocation10 + $0x3a8] sm:$0xff]
    %v1386 = vld [vmem:[#allocation10 + $0x3b0] sm:$0xff]
    %v1387 = vld [vmem:[#allocation10 + $0x3b8] sm:$0xff]
    %v1388 = vld [vmem:[#allocation10 + $0x3c0] sm:$0xff]
    %v1389 = vld [vmem:[#allocation10 + $0x3c8] sm:$0xff]
    %v1390 = vld [vmem:[#allocation10 + $0x3d0] sm:$0xff]
    %v1391 = vld [vmem:[#allocation10 + $0x3d8] sm:$0xff]
    %v1392 = vld [vmem:[#allocation10 + $0x3e0] sm:$0xff]
    %v1393 = vld [vmem:[#allocation10 + $0x3e8] sm:$0xff]
    %v1394 = vld [vmem:[#allocation10 + $0x3f0] sm:$0xff]
    %v1395 = vld [vmem:[#allocation10 + $0x3f8] sm:$0xff]
    %v1396 = vld [vmem:[#allocation12] sm:$0xf]
    %v1398 = vperm.slane %v1396, 0
    %v1399 = vperm.slane %v1396, 1
    %v1400 = vperm.slane %v1396, 2
    %v1401 = vperm.slane %v1396, 3
    %v1534 = vunpack.c.l.b16 %v1268
    %v1535 = vunpack.c.h.b16 %v1268
    %v1536 = vunpack.c.l.b16 %v1269
    %v1537 = vunpack.c.h.b16 %v1269
    %v1538 = vunpack.c.l.b16 %v1270
    %v1539 = vunpack.c.h.b16 %v1270
    %v1540 = vunpack.c.l.b16 %v1271
    %v1541 = vunpack.c.h.b16 %v1271
    %v1542 = vunpack.c.l.b16 %v1272
    %v1543 = vunpack.c.h.b16 %v1272
    %v1544 = vunpack.c.l.b16 %v1273
    %v1545 = vunpack.c.h.b16 %v1273
    %v1546 = vunpack.c.l.b16 %v1274
    %v1547 = vunpack.c.h.b16 %v1274
    %v1548 = vunpack.c.l.b16 %v1275
    %v1549 = vunpack.c.h.b16 %v1275
    %v1550 = vunpack.c.l.b16 %v1276
    %v1551 = vunpack.c.h.b16 %v1276
    %v1552 = vunpack.c.l.b16 %v1277
    %v1553 = vunpack.c.h.b16 %v1277
    %v1554 = vunpack.c.l.b16 %v1278
    %v1555 = vunpack.c.h.b16 %v1278
    %v1556 = vunpack.c.l.b16 %v1279
    %v1557 = vunpack.c.h.b16 %v1279
    %v1558 = vunpack.c.l.b16 %v1280
    %v1559 = vunpack.c.h.b16 %v1280
    %v1560 = vunpack.c.l.b16 %v1281
    %v1561 = vunpack.c.h.b16 %v1281
    %v1562 = vunpack.c.l.b16 %v1282
    %v1563 = vunpack.c.h.b16 %v1282
    %v1564 = vunpack.c.l.b16 %v1283
    %v1565 = vunpack.c.h.b16 %v1283
    %v1566 = vunpack.c.l.b16 %v1284
    %v1567 = vunpack.c.h.b16 %v1284
    %v1568 = vunpack.c.l.b16 %v1285
    %v1569 = vunpack.c.h.b16 %v1285
    %v1570 = vunpack.c.l.b16 %v1286
    %v1571 = vunpack.c.h.b16 %v1286
    %v1572 = vunpack.c.l.b16 %v1287
    %v1573 = vunpack.c.h.b16 %v1287
    %v1574 = vunpack.c.l.b16 %v1288
    %v1575 = vunpack.c.h.b16 %v1288
    %v1576 = vunpack.c.l.b16 %v1289
    %v1577 = vunpack.c.h.b16 %v1289
    %v1578 = vunpack.c.l.b16 %v1290
    %v1579 = vunpack.c.h.b16 %v1290
    %v1580 = vunpack.c.l.b16 %v1291
    %v1581 = vunpack.c.h.b16 %v1291
    %v1582 = vunpack.c.l.b16 %v1292
    %v1583 = vunpack.c.h.b16 %v1292
    %v1584 = vunpack.c.l.b16 %v1293
    %v1585 = vunpack.c.h.b16 %v1293
    %v1586 = vunpack.c.l.b16 %v1294
    %v1587 = vunpack.c.h.b16 %v1294
    %v1588 = vunpack.c.l.b16 %v1295
    %v1589 = vunpack.c.h.b16 %v1295
    %v1590 = vunpack.c.l.b16 %v1296
    %v1591 = vunpack.c.h.b16 %v1296
    %v1592 = vunpack.c.l.b16 %v1297
    %v1593 = vunpack.c.h.b16 %v1297
    %v1594 = vunpack.c.l.b16 %v1298
    %v1595 = vunpack.c.h.b16 %v1298
    %v1596 = vunpack.c.l.b16 %v1299
    %v1597 = vunpack.c.h.b16 %v1299
    %v1598 = vunpack.c.l.b16 %v1300
    %v1599 = vunpack.c.h.b16 %v1300
    %v1600 = vunpack.c.l.b16 %v1301
    %v1601 = vunpack.c.h.b16 %v1301
    %v1602 = vunpack.c.l.b16 %v1302
    %v1603 = vunpack.c.h.b16 %v1302
    %v1604 = vunpack.c.l.b16 %v1303
    %v1605 = vunpack.c.h.b16 %v1303
    %v1606 = vunpack.c.l.b16 %v1304
    %v1607 = vunpack.c.h.b16 %v1304
    %v1608 = vunpack.c.l.b16 %v1305
    %v1609 = vunpack.c.h.b16 %v1305
    %v1610 = vunpack.c.l.b16 %v1306
    %v1611 = vunpack.c.h.b16 %v1306
    %v1612 = vunpack.c.l.b16 %v1307
    %v1613 = vunpack.c.h.b16 %v1307
    %v1614 = vunpack.c.l.b16 %v1308
    %v1615 = vunpack.c.h.b16 %v1308
    %v1616 = vunpack.c.l.b16 %v1309
    %v1617 = vunpack.c.h.b16 %v1309
    %v1618 = vunpack.c.l.b16 %v1310
    %v1619 = vunpack.c.h.b16 %v1310
    %v1620 = vunpack.c.l.b16 %v1311
    %v1621 = vunpack.c.h.b16 %v1311
    %v1622 = vunpack.c.l.b16 %v1312
    %v1623 = vunpack.c.h.b16 %v1312
    %v1624 = vunpack.c.l.b16 %v1313
    %v1625 = vunpack.c.h.b16 %v1313
    %v1626 = vunpack.c.l.b16 %v1314
    %v1627 = vunpack.c.h.b16 %v1314
    %v1628 = vunpack.c.l.b16 %v1315
    %v1629 = vunpack.c.h.b16 %v1315
    %v1630 = vunpack.c.l.b16 %v1316
    %v1631 = vunpack.c.h.b16 %v1316
    %v1632 = vunpack.c.l.b16 %v1317
    %v1633 = vunpack.c.h.b16 %v1317
    %v1634 = vunpack.c.l.b16 %v1318
    %v1635 = vunpack.c.h.b16 %v1318
    %v1636 = vunpack.c.l.b16 %v1319
    %v1637 = vunpack.c.h.b16 %v1319
    %v1638 = vunpack.c.l.b16 %v1320
    %v1639 = vunpack.c.h.b16 %v1320
    %v1640 = vunpack.c.l.b16 %v1321
    %v1641 = vunpack.c.h.b16 %v1321
    %v1642 = vunpack.c.l.b16 %v1322
    %v1643 = vunpack.c.h.b16 %v1322
    %v1644 = vunpack.c.l.b16 %v1323
    %v1645 = vunpack.c.h.b16 %v1323
    %v1646 = vunpack.c.l.b16 %v1324
    %v1647 = vunpack.c.h.b16 %v1324
    %v1648 = vunpack.c.l.b16 %v1325
    %v1649 = vunpack.c.h.b16 %v1325
    %v1650 = vunpack.c.l.b16 %v1326
    %v1651 = vunpack.c.h.b16 %v1326
    %v1652 = vunpack.c.l.b16 %v1327
    %v1653 = vunpack.c.h.b16 %v1327
    %v1654 = vunpack.c.l.b16 %v1328
    %v1655 = vunpack.c.h.b16 %v1328
    %v1656 = vunpack.c.l.b16 %v1329
    %v1657 = vunpack.c.h.b16 %v1329
    %v1658 = vunpack.c.l.b16 %v1330
    %v1659 = vunpack.c.h.b16 %v1330
    %v1660 = vunpack.c.l.b16 %v1331
    %v1661 = vunpack.c.h.b16 %v1331
    %v1662 = vunpack.c.l.b16 %v1332
    %v1663 = vunpack.c.h.b16 %v1332
    %v1664 = vunpack.c.l.b16 %v1333
    %v1665 = vunpack.c.h.b16 %v1333
    %v1666 = vunpack.c.l.b16 %v1334
    %v1667 = vunpack.c.h.b16 %v1334
    %v1668 = vunpack.c.l.b16 %v1335
    %v1669 = vunpack.c.h.b16 %v1335
    %v1670 = vunpack.c.l.b16 %v1336
    %v1671 = vunpack.c.h.b16 %v1336
    %v1672 = vunpack.c.l.b16 %v1337
    %v1673 = vunpack.c.h.b16 %v1337
    %v1674 = vunpack.c.l.b16 %v1338
    %v1675 = vunpack.c.h.b16 %v1338
    %v1676 = vunpack.c.l.b16 %v1339
    %v1677 = vunpack.c.h.b16 %v1339
    %v1678 = vunpack.c.l.b16 %v1340
    %v1679 = vunpack.c.h.b16 %v1340
    %v1680 = vunpack.c.l.b16 %v1341
    %v1681 = vunpack.c.h.b16 %v1341
    %v1682 = vunpack.c.l.b16 %v1342
    %v1683 = vunpack.c.h.b16 %v1342
    %v1684 = vunpack.c.l.b16 %v1343
    %v1685 = vunpack.c.h.b16 %v1343
    %v1686 = vunpack.c.l.b16 %v1344
    %v1687 = vunpack.c.h.b16 %v1344
    %v1688 = vunpack.c.l.b16 %v1345
    %v1689 = vunpack.c.h.b16 %v1345
    %v1690 = vunpack.c.l.b16 %v1346
    %v1691 = vunpack.c.h.b16 %v1346
    %v1692 = vunpack.c.l.b16 %v1347
    %v1693 = vunpack.c.h.b16 %v1347
    %v1694 = vunpack.c.l.b16 %v1348
    %v1695 = vunpack.c.h.b16 %v1348
    %v1696 = vunpack.c.l.b16 %v1349
    %v1697 = vunpack.c.h.b16 %v1349
    %v1698 = vunpack.c.l.b16 %v1350
    %v1699 = vunpack.c.h.b16 %v1350
    %v1700 = vunpack.c.l.b16 %v1351
    %v1701 = vunpack.c.h.b16 %v1351
    %v1702 = vunpack.c.l.b16 %v1352
    %v1703 = vunpack.c.h.b16 %v1352
    %v1704 = vunpack.c.l.b16 %v1353
    %v1705 = vunpack.c.h.b16 %v1353
    %v1706 = vunpack.c.l.b16 %v1354
    %v1707 = vunpack.c.h.b16 %v1354
    %v1708 = vunpack.c.l.b16 %v1355
    %v1709 = vunpack.c.h.b16 %v1355
    %v1710 = vunpack.c.l.b16 %v1356
    %v1711 = vunpack.c.h.b16 %v1356
    %v1712 = vunpack.c.l.b16 %v1357
    %v1713 = vunpack.c.h.b16 %v1357
    %v1714 = vunpack.c.l.b16 %v1358
    %v1715 = vunpack.c.h.b16 %v1358
    %v1716 = vunpack.c.l.b16 %v1359
    %v1717 = vunpack.c.h.b16 %v1359
    %v1718 = vunpack.c.l.b16 %v1360
    %v1719 = vunpack.c.h.b16 %v1360
    %v1720 = vunpack.c.l.b16 %v1361
    %v1721 = vunpack.c.h.b16 %v1361
    %v1722 = vunpack.c.l.b16 %v1362
    %v1723 = vunpack.c.h.b16 %v1362
    %v1724 = vunpack.c.l.b16 %v1363
    %v1725 = vunpack.c.h.b16 %v1363
    %v1726 = vunpack.c.l.b16 %v1364
    %v1727 = vunpack.c.h.b16 %v1364
    %v1728 = vunpack.c.l.b16 %v1365
    %v1729 = vunpack.c.h.b16 %v1365
    %v1730 = vunpack.c.l.b16 %v1366
    %v1731 = vunpack.c.h.b16 %v1366
    %v1732 = vunpack.c.l.b16 %v1367
    %v1733 = vunpack.c.h.b16 %v1367
    %v1734 = vunpack.c.l.b16 %v1368
    %v1735 = vunpack.c.h.b16 %v1368
    %v1736 = vunpack.c.l.b16 %v1369
    %v1737 = vunpack.c.h.b16 %v1369
    %v1738 = vunpack.c.l.b16 %v1370
    %v1739 = vunpack.c.h.b16 %v1370
    %v1740 = vunpack.c.l.b16 %v1371
    %v1741 = vunpack.c.h.b16 %v1371
    %v1742 = vunpack.c.l.b16 %v1372
    %v1743 = vunpack.c.h.b16 %v1372
    %v1744 = vunpack.c.l.b16 %v1373
    %v1745 = vunpack.c.h.b16 %v1373
    %v1746 = vunpack.c.l.b16 %v1374
    %v1747 = vunpack.c.h.b16 %v1374
    %v1748 = vunpack.c.l.b16 %v1375
    %v1749 = vunpack.c.h.b16 %v1375
    %v1750 = vunpack.c.l.b16 %v1376
    %v1751 = vunpack.c.h.b16 %v1376
    %v1752 = vunpack.c.l.b16 %v1377
    %v1753 = vunpack.c.h.b16 %v1377
    %v1754 = vunpack.c.l.b16 %v1378
    %v1755 = vunpack.c.h.b16 %v1378
    %v1756 = vunpack.c.l.b16 %v1379
    %v1757 = vunpack.c.h.b16 %v1379
    %v1758 = vunpack.c.l.b16 %v1380
    %v1759 = vunpack.c.h.b16 %v1380
    %v1760 = vunpack.c.l.b16 %v1381
    %v1761 = vunpack.c.h.b16 %v1381
    %v1762 = vunpack.c.l.b16 %v1382
    %v1763 = vunpack.c.h.b16 %v1382
    %v1764 = vunpack.c.l.b16 %v1383
    %v1765 = vunpack.c.h.b16 %v1383
    %v1766 = vunpack.c.l.b16 %v1384
    %v1767 = vunpack.c.h.b16 %v1384
    %v1768 = vunpack.c.l.b16 %v1385
    %v1769 = vunpack.c.h.b16 %v1385
    %v1770 = vunpack.c.l.b16 %v1386
    %v1771 = vunpack.c.h.b16 %v1386
    %v1772 = vunpack.c.l.b16 %v1387
    %v1773 = vunpack.c.h.b16 %v1387
    %v1774 = vunpack.c.l.b16 %v1388
    %v1775 = vunpack.c.h.b16 %v1388
    %v1776 = vunpack.c.l.b16 %v1389
    %v1777 = vunpack.c.h.b16 %v1389
    %v1778 = vunpack.c.l.b16 %v1390
    %v1779 = vunpack.c.h.b16 %v1390
    %v1780 = vunpack.c.l.b16 %v1391
    %v1781 = vunpack.c.h.b16 %v1391
    %v1782 = vunpack.c.l.b16 %v1392
    %v1783 = vunpack.c.h.b16 %v1392
    %v1784 = vunpack.c.l.b16 %v1393
    %v1785 = vunpack.c.h.b16 %v1393
    %v1786 = vunpack.c.l.b16 %v1394
    %v1787 = vunpack.c.h.b16 %v1394
    %v1788 = vunpack.c.l.b16 %v1395
    %v1789 = vunpack.c.h.b16 %v1395
    %v1790 = vpack.c.b16 %v1538, %v1534
    %v1791 = vpack.c.b16 %v1539, %v1535
    %v1792 = vpack.c.b16 %v1540, %v1536
    %v1793 = vpack.c.b16 %v1541, %v1537
    %v1794 = vpack.c.b16 %v1546, %v1542
    %v1795 = vpack.c.b16 %v1547, %v1543
    %v1796 = vpack.c.b16 %v1548, %v1544
    %v1797 = vpack.c.b16 %v1549, %v1545
    %v1798 = vpack.c.b16 %v1554, %v1550
    %v1799 = vpack.c.b16 %v1555, %v1551
    %v1800 = vpack.c.b16 %v1556, %v1552
    %v1801 = vpack.c.b16 %v1557, %v1553
    %v1802 = vpack.c.b16 %v1562, %v1558
    %v1803 = vpack.c.b16 %v1563, %v1559
    %v1804 = vpack.c.b16 %v1564, %v1560
    %v1805 = vpack.c.b16 %v1565, %v1561
    %v1806 = vpack.c.b16 %v1570, %v1566
    %v1807 = vpack.c.b16 %v1571, %v1567
    %v1808 = vpack.c.b16 %v1572, %v1568
    %v1809 = vpack.c.b16 %v1573, %v1569
    %v1810 = vpack.c.b16 %v1578, %v1574
    %v1811 = vpack.c.b16 %v1579, %v1575
    %v1812 = vpack.c.b16 %v1580, %v1576
    %v1813 = vpack.c.b16 %v1581, %v1577
    %v1814 = vpack.c.b16 %v1586, %v1582
    %v1815 = vpack.c.b16 %v1587, %v1583
    %v1816 = vpack.c.b16 %v1588, %v1584
    %v1817 = vpack.c.b16 %v1589, %v1585
    %v1818 = vpack.c.b16 %v1594, %v1590
    %v1819 = vpack.c.b16 %v1595, %v1591
    %v1820 = vpack.c.b16 %v1596, %v1592
    %v1821 = vpack.c.b16 %v1597, %v1593
    %v1822 = vpack.c.b16 %v1602, %v1598
    %v1823 = vpack.c.b16 %v1603, %v1599
    %v1824 = vpack.c.b16 %v1604, %v1600
    %v1825 = vpack.c.b16 %v1605, %v1601
    %v1826 = vpack.c.b16 %v1610, %v1606
    %v1827 = vpack.c.b16 %v1611, %v1607
    %v1828 = vpack.c.b16 %v1612, %v1608
    %v1829 = vpack.c.b16 %v1613, %v1609
    %v1830 = vpack.c.b16 %v1618, %v1614
    %v1831 = vpack.c.b16 %v1619, %v1615
    %v1832 = vpack.c.b16 %v1620, %v1616
    %v1833 = vpack.c.b16 %v1621, %v1617
    %v1834 = vpack.c.b16 %v1626, %v1622
    %v1835 = vpack.c.b16 %v1627, %v1623
    %v1836 = vpack.c.b16 %v1628, %v1624
    %v1837 = vpack.c.b16 %v1629, %v1625
    %v1838 = vpack.c.b16 %v1634, %v1630
    %v1839 = vpack.c.b16 %v1635, %v1631
    %v1840 = vpack.c.b16 %v1636, %v1632
    %v1841 = vpack.c.b16 %v1637, %v1633
    %v1842 = vpack.c.b16 %v1642, %v1638
    %v1843 = vpack.c.b16 %v1643, %v1639
    %v1844 = vpack.c.b16 %v1644, %v1640
    %v1845 = vpack.c.b16 %v1645, %v1641
    %v1846 = vpack.c.b16 %v1650, %v1646
    %v1847 = vpack.c.b16 %v1651, %v1647
    %v1848 = vpack.c.b16 %v1652, %v1648
    %v1849 = vpack.c.b16 %v1653, %v1649
    %v1850 = vpack.c.b16 %v1658, %v1654
    %v1851 = vpack.c.b16 %v1659, %v1655
    %v1852 = vpack.c.b16 %v1660, %v1656
    %v1853 = vpack.c.b16 %v1661, %v1657
    %v1854 = vpack.c.b16 %v1666, %v1662
    %v1855 = vpack.c.b16 %v1667, %v1663
    %v1856 = vpack.c.b16 %v1668, %v1664
    %v1857 = vpack.c.b16 %v1669, %v1665
    %v1858 = vpack.c.b16 %v1674, %v1670
    %v1859 = vpack.c.b16 %v1675, %v1671
    %v1860 = vpack.c.b16 %v1676, %v1672
    %v1861 = vpack.c.b16 %v1677, %v1673
    %v1862 = vpack.c.b16 %v1682, %v1678
    %v1863 = vpack.c.b16 %v1683, %v1679
    %v1864 = vpack.c.b16 %v1684, %v1680
    %v1865 = vpack.c.b16 %v1685, %v1681
    %v1866 = vpack.c.b16 %v1690, %v1686
    %v1867 = vpack.c.b16 %v1691, %v1687
    %v1868 = vpack.c.b16 %v1692, %v1688
    %v1869 = vpack.c.b16 %v1693, %v1689
    %v1870 = vpack.c.b16 %v1698, %v1694
    %v1871 = vpack.c.b16 %v1699, %v1695
    %v1872 = vpack.c.b16 %v1700, %v1696
    %v1873 = vpack.c.b16 %v1701, %v1697
    %v1874 = vpack.c.b16 %v1706, %v1702
    %v1875 = vpack.c.b16 %v1707, %v1703
    %v1876 = vpack.c.b16 %v1708, %v1704
    %v1877 = vpack.c.b16 %v1709, %v1705
    %v1878 = vpack.c.b16 %v1714, %v1710
    %v1879 = vpack.c.b16 %v1715, %v1711
    %v1880 = vpack.c.b16 %v1716, %v1712
    %v1881 = vpack.c.b16 %v1717, %v1713
    %v1882 = vpack.c.b16 %v1722, %v1718
    %v1883 = vpack.c.b16 %v1723, %v1719
    %v1884 = vpack.c.b16 %v1724, %v1720
    %v1885 = vpack.c.b16 %v1725, %v1721
    %v1886 = vpack.c.b16 %v1730, %v1726
    %v1887 = vpack.c.b16 %v1731, %v1727
    %v1888 = vpack.c.b16 %v1732, %v1728
    %v1889 = vpack.c.b16 %v1733, %v1729
    %v1890 = vpack.c.b16 %v1738, %v1734
    %v1891 = vpack.c.b16 %v1739, %v1735
    %v1892 = vpack.c.b16 %v1740, %v1736
    %v1893 = vpack.c.b16 %v1741, %v1737
    %v1894 = vpack.c.b16 %v1746, %v1742
    %v1895 = vpack.c.b16 %v1747, %v1743
    %v1896 = vpack.c.b16 %v1748, %v1744
    %v1897 = vpack.c.b16 %v1749, %v1745
    %v1898 = vpack.c.b16 %v1754, %v1750
    %v1899 = vpack.c.b16 %v1755, %v1751
    %v1900 = vpack.c.b16 %v1756, %v1752
    %v1901 = vpack.c.b16 %v1757, %v1753
    %v1902 = vpack.c.b16 %v1762, %v1758
    %v1903 = vpack.c.b16 %v1763, %v1759
    %v1904 = vpack.c.b16 %v1764, %v1760
    %v1905 = vpack.c.b16 %v1765, %v1761
    %v1906 = vpack.c.b16 %v1770, %v1766
    %v1907 = vpack.c.b16 %v1771, %v1767
    %v1908 = vpack.c.b16 %v1772, %v1768
    %v1909 = vpack.c.b16 %v1773, %v1769
    %v1910 = vpack.c.b16 %v1778, %v1774
    %v1911 = vpack.c.b16 %v1779, %v1775
    %v1912 = vpack.c.b16 %v1780, %v1776
    %v1913 = vpack.c.b16 %v1781, %v1777
    %v1914 = vpack.c.b16 %v1786, %v1782
    %v1915 = vpack.c.b16 %v1787, %v1783
    %v1916 = vpack.c.b16 %v1788, %v1784
    %v1917 = vpack.c.b16 %v1789, %v1785
    %2046 = vmatpush.bf16.msra.mxu0 %v1818
    %2047 = vmatpush.bf16.msra.mxu0 %v1814
    %2048 = vmatpush.bf16.msra.mxu0 %v1810
    %2049 = vmatpush.bf16.msra.mxu0 %v1806
    %2050 = vmatpush.bf16.msra.mxu0 %v1802
    %2051 = vmatpush.bf16.msra.mxu0 %v1798
    %2052 = vmatpush.bf16.msra.mxu0 %v1794
    %2053 = vmatpush.bf16.msra.mxu0 %v1790
    %2054 = vmatmul.bf16.gmra.mxu0 %v1264
    %v2055 = vpop.f32.mrf.mxu0
    %v2056 = vadd.f32 %v1398, %v2055
    %v2057 = vpop.f32.mrf.mxu0
    %2058 = vdwg.mxu0
    %2059 = vmatpush.bf16.msra.mxu0 %v1850
    %2060 = vmatpush.bf16.msra.mxu0 %v1846
    %2061 = vmatpush.bf16.msra.mxu0 %v1842
    %2062 = vmatpush.bf16.msra.mxu0 %v1838
    %2063 = vmatpush.bf16.msra.mxu0 %v1834
    %2064 = vmatpush.bf16.msra.mxu0 %v1830
    %2065 = vmatpush.bf16.msra.mxu0 %v1826
    %2066 = vmatpush.bf16.msra.mxu0 %v1822
    %2067 = vmatmul.bf16.gmra.mxu0 %v1265
    %v2068 = vpop.f32.mrf.mxu0
    %v2069 = vadd.f32 %v2056, %v2068
    %v2070 = vpop.f32.mrf.mxu0
    %2071 = vdwg.mxu0
    %2072 = vmatpush.bf16.msra.mxu0 %v1882
    %2073 = vmatpush.bf16.msra.mxu0 %v1878
    %2074 = vmatpush.bf16.msra.mxu0 %v1874
    %2075 = vmatpush.bf16.msra.mxu0 %v1870
    %2076 = vmatpush.bf16.msra.mxu0 %v1866
    %2077 = vmatpush.bf16.msra.mxu0 %v1862
    %2078 = vmatpush.bf16.msra.mxu0 %v1858
    %2079 = vmatpush.bf16.msra.mxu0 %v1854
    %2080 = vmatmul.bf16.gmra.mxu0 %v1266
    %v2081 = vpop.f32.mrf.mxu0
    %v2082 = vadd.f32 %v2069, %v2081
    %v2083 = vpop.f32.mrf.mxu0
    %2084 = vdwg.mxu0
    %2085 = vmatpush.bf16.msra.mxu0 %v1914
    %2086 = vmatpush.bf16.msra.mxu0 %v1910
    %2087 = vmatpush.bf16.msra.mxu0 %v1906
    %2088 = vmatpush.bf16.msra.mxu0 %v1902
    %2089 = vmatpush.bf16.msra.mxu0 %v1898
    %2090 = vmatpush.bf16.msra.mxu0 %v1894
    %2091 = vmatpush.bf16.msra.mxu0 %v1890
    %2092 = vmatpush.bf16.msra.mxu0 %v1886
    %2093 = vmatmul.bf16.gmra.mxu0 %v1267
    %v2094 = vpop.f32.mrf.mxu0
    %v2095 = vadd.f32 %v2082, %v2094
    %v2096 = vpop.f32.mrf.mxu0
    %2097 = vdwg.mxu0
    %2098 = vmatpush.bf16.msra.mxu0 %v1819
    %2099 = vmatpush.bf16.msra.mxu0 %v1815
    %2100 = vmatpush.bf16.msra.mxu0 %v1811
    %2101 = vmatpush.bf16.msra.mxu0 %v1807
    %2102 = vmatpush.bf16.msra.mxu0 %v1803
    %2103 = vmatpush.bf16.msra.mxu0 %v1799
    %2104 = vmatpush.bf16.msra.mxu0 %v1795
    %2105 = vmatpush.bf16.msra.mxu0 %v1791
    %2106 = vmatmul.bf16.gmra.mxu0 %v1264
    %v2107 = vpop.f32.mrf.mxu0
    %v2108 = vadd.f32 %v1399, %v2107
    %v2109 = vpop.f32.mrf.mxu0
    %2110 = vdwg.mxu0
    %2111 = vmatpush.bf16.msra.mxu0 %v1851
    %2112 = vmatpush.bf16.msra.mxu0 %v1847
    %2113 = vmatpush.bf16.msra.mxu0 %v1843
    %2114 = vmatpush.bf16.msra.mxu0 %v1839
    %2115 = vmatpush.bf16.msra.mxu0 %v1835
    %2116 = vmatpush.bf16.msra.mxu0 %v1831
    %2117 = vmatpush.bf16.msra.mxu0 %v1827
    %2118 = vmatpush.bf16.msra.mxu0 %v1823
    %2119 = vmatmul.bf16.gmra.mxu0 %v1265
    %v2120 = vpop.f32.mrf.mxu0
    %v2121 = vadd.f32 %v2108, %v2120
    %v2122 = vpop.f32.mrf.mxu0
    %2123 = vdwg.mxu0
    %2124 = vmatpush.bf16.msra.mxu0 %v1883
    %2125 = vmatpush.bf16.msra.mxu0 %v1879
    %2126 = vmatpush.bf16.msra.mxu0 %v1875
    %2127 = vmatpush.bf16.msra.mxu0 %v1871
    %2128 = vmatpush.bf16.msra.mxu0 %v1867
    %2129 = vmatpush.bf16.msra.mxu0 %v1863
    %2130 = vmatpush.bf16.msra.mxu0 %v1859
    %2131 = vmatpush.bf16.msra.mxu0 %v1855
    %2132 = vmatmul.bf16.gmra.mxu0 %v1266
    %v2133 = vpop.f32.mrf.mxu0
    %v2134 = vadd.f32 %v2121, %v2133
    %v2135 = vpop.f32.mrf.mxu0
    %2136 = vdwg.mxu0
    %2137 = vmatpush.bf16.msra.mxu0 %v1915
    %2138 = vmatpush.bf16.msra.mxu0 %v1911
    %2139 = vmatpush.bf16.msra.mxu0 %v1907
    %2140 = vmatpush.bf16.msra.mxu0 %v1903
    %2141 = vmatpush.bf16.msra.mxu0 %v1899
    %2142 = vmatpush.bf16.msra.mxu0 %v1895
    %2143 = vmatpush.bf16.msra.mxu0 %v1891
    %2144 = vmatpush.bf16.msra.mxu0 %v1887
    %2145 = vmatmul.bf16.gmra.mxu0 %v1267
    %v2146 = vpop.f32.mrf.mxu0
    %v2147 = vadd.f32 %v2134, %v2146
    %v2148 = vpop.f32.mrf.mxu0
    %2149 = vdwg.mxu0
    %2150 = vmatpush.bf16.msra.mxu0 %v1820
    %2151 = vmatpush.bf16.msra.mxu0 %v1816
    %2152 = vmatpush.bf16.msra.mxu0 %v1812
    %2153 = vmatpush.bf16.msra.mxu0 %v1808
    %2154 = vmatpush.bf16.msra.mxu0 %v1804
    %2155 = vmatpush.bf16.msra.mxu0 %v1800
    %2156 = vmatpush.bf16.msra.mxu0 %v1796
    %2157 = vmatpush.bf16.msra.mxu0 %v1792
    %2158 = vmatmul.bf16.gmra.mxu0 %v1264
    %v2159 = vpop.f32.mrf.mxu0
    %v2160 = vadd.f32 %v1400, %v2159
    %v2161 = vpop.f32.mrf.mxu0
    %2162 = vdwg.mxu0
    %2163 = vmatpush.bf16.msra.mxu0 %v1852
    %2164 = vmatpush.bf16.msra.mxu0 %v1848
    %2165 = vmatpush.bf16.msra.mxu0 %v1844
    %2166 = vmatpush.bf16.msra.mxu0 %v1840
    %2167 = vmatpush.bf16.msra.mxu0 %v1836
    %2168 = vmatpush.bf16.msra.mxu0 %v1832
    %2169 = vmatpush.bf16.msra.mxu0 %v1828
    %2170 = vmatpush.bf16.msra.mxu0 %v1824
    %2171 = vmatmul.bf16.gmra.mxu0 %v1265
    %v2172 = vpop.f32.mrf.mxu0
    %v2173 = vadd.f32 %v2160, %v2172
    %v2174 = vpop.f32.mrf.mxu0
    %2175 = vdwg.mxu0
    %2176 = vmatpush.bf16.msra.mxu0 %v1884
    %2177 = vmatpush.bf16.msra.mxu0 %v1880
    %2178 = vmatpush.bf16.msra.mxu0 %v1876
    %2179 = vmatpush.bf16.msra.mxu0 %v1872
    %2180 = vmatpush.bf16.msra.mxu0 %v1868
    %2181 = vmatpush.bf16.msra.mxu0 %v1864
    %2182 = vmatpush.bf16.msra.mxu0 %v1860
    %2183 = vmatpush.bf16.msra.mxu0 %v1856
    %2184 = vmatmul.bf16.gmra.mxu0 %v1266
    %v2185 = vpop.f32.mrf.mxu0
    %v2186 = vadd.f32 %v2173, %v2185
    %v2187 = vpop.f32.mrf.mxu0
    %2188 = vdwg.mxu0
    %2189 = vmatpush.bf16.msra.mxu0 %v1916
    %2190 = vmatpush.bf16.msra.mxu0 %v1912
    %2191 = vmatpush.bf16.msra.mxu0 %v1908
    %2192 = vmatpush.bf16.msra.mxu0 %v1904
    %2193 = vmatpush.bf16.msra.mxu0 %v1900
    %2194 = vmatpush.bf16.msra.mxu0 %v1896
    %2195 = vmatpush.bf16.msra.mxu0 %v1892
    %2196 = vmatpush.bf16.msra.mxu0 %v1888
    %2197 = vmatmul.bf16.gmra.mxu0 %v1267
    %v2198 = vpop.f32.mrf.mxu0
    %v2199 = vadd.f32 %v2186, %v2198
    %v2200 = vpop.f32.mrf.mxu0
    %2201 = vdwg.mxu0
    %2202 = vmatpush.bf16.msra.mxu0 %v1821
    %2203 = vmatpush.bf16.msra.mxu0 %v1817
    %2204 = vmatpush.bf16.msra.mxu0 %v1813
    %2205 = vmatpush.bf16.msra.mxu0 %v1809
    %2206 = vmatpush.bf16.msra.mxu0 %v1805
    %2207 = vmatpush.bf16.msra.mxu0 %v1801
    %2208 = vmatpush.bf16.msra.mxu0 %v1797
    %2209 = vmatpush.bf16.msra.mxu0 %v1793
    %2210 = vmatmul.bf16.gmra.mxu0 %v1264
    %v2211 = vpop.f32.mrf.mxu0
    %v2212 = vadd.f32 %v1401, %v2211
    %v2213 = vpop.f32.mrf.mxu0
    %2214 = vdwg.mxu0
    %2215 = vmatpush.bf16.msra.mxu0 %v1853
    %2216 = vmatpush.bf16.msra.mxu0 %v1849
    %2217 = vmatpush.bf16.msra.mxu0 %v1845
    %2218 = vmatpush.bf16.msra.mxu0 %v1841
    %2219 = vmatpush.bf16.msra.mxu0 %v1837
    %2220 = vmatpush.bf16.msra.mxu0 %v1833
    %2221 = vmatpush.bf16.msra.mxu0 %v1829
    %2222 = vmatpush.bf16.msra.mxu0 %v1825
    %2223 = vmatmul.bf16.gmra.mxu0 %v1265
    %v2224 = vpop.f32.mrf.mxu0
    %v2225 = vadd.f32 %v2212, %v2224
    %v2226 = vpop.f32.mrf.mxu0
    %2227 = vdwg.mxu0
    %2228 = vmatpush.bf16.msra.mxu0 %v1885
    %2229 = vmatpush.bf16.msra.mxu0 %v1881
    %2230 = vmatpush.bf16.msra.mxu0 %v1877
    %2231 = vmatpush.bf16.msra.mxu0 %v1873
    %2232 = vmatpush.bf16.msra.mxu0 %v1869
    %2233 = vmatpush.bf16.msra.mxu0 %v1865
    %2234 = vmatpush.bf16.msra.mxu0 %v1861
    %2235 = vmatpush.bf16.msra.mxu0 %v1857
    %2236 = vmatmul.bf16.gmra.mxu0 %v1266
    %v2237 = vpop.f32.mrf.mxu0
    %v2238 = vadd.f32 %v2225, %v2237
    %v2239 = vpop.f32.mrf.mxu0
    %2240 = vdwg.mxu0
    %2241 = vmatpush.bf16.msra.mxu0 %v1917
    %2242 = vmatpush.bf16.msra.mxu0 %v1913
    %2243 = vmatpush.bf16.msra.mxu0 %v1909
    %2244 = vmatpush.bf16.msra.mxu0 %v1905
    %2245 = vmatpush.bf16.msra.mxu0 %v1901
    %2246 = vmatpush.bf16.msra.mxu0 %v1897
    %2247 = vmatpush.bf16.msra.mxu0 %v1893
    %2248 = vmatpush.bf16.msra.mxu0 %v1889
    %2249 = vmatmul.bf16.gmra.mxu0 %v1267
    %v2250 = vpop.f32.mrf.mxu0
    %v2251 = vadd.f32 %v2238, %v2250
    %v2252 = vpop.f32.mrf.mxu0
    %2253 = vdwg.mxu0
    %v2254 = vmax.f32 %v2095, 0.0
    %v2255 = vmax.f32 %v2147, 0.0
    %v2256 = vmax.f32 %v2199, 0.0
    %v2257 = vmax.f32 %v2251, 0.0
    %v2258 = vpack.c.bf16 %v2254, %v2254
    %v2259 = vpack.c.bf16 %v2255, %v2255
    %v2260 = vpack.c.bf16 %v2256, %v2256
    %v2261 = vpack.c.bf16 %v2257, %v2257
    %v2262 = vld [vmem:[#allocation13] sm:$0xf]
    %v2263 = vld [vmem:[#allocation13 + $0x4] sm:$0xf]
    %v2264 = vld [vmem:[#allocation13 + $0x8] sm:$0xf]
    %v2265 = vld [vmem:[#allocation13 + $0xc] sm:$0xf]
    %v2266 = vld [vmem:[#allocation13 + $0x10] sm:$0xf]
    %v2267 = vld [vmem:[#allocation13 + $0x14] sm:$0xf]
    %v2268 = vld [vmem:[#allocation13 + $0x18] sm:$0xf]
    %v2269 = vld [vmem:[#allocation13 + $0x1c] sm:$0xf]
    %v2270 = vld [vmem:[#allocation13 + $0x20] sm:$0xf]
    %v2271 = vld [vmem:[#allocation13 + $0x24] sm:$0xf]
    %v2272 = vld [vmem:[#allocation13 + $0x28] sm:$0xf]
    %v2273 = vld [vmem:[#allocation13 + $0x2c] sm:$0xf]
    %v2274 = vld [vmem:[#allocation13 + $0x30] sm:$0xf]
    %v2275 = vld [vmem:[#allocation13 + $0x34] sm:$0xf]
    %v2276 = vld [vmem:[#allocation13 + $0x38] sm:$0xf]
    %v2277 = vld [vmem:[#allocation13 + $0x3c] sm:$0xf]
    %v2278 = vld [vmem:[#allocation13 + $0x40] sm:$0xf]
    %v2279 = vld [vmem:[#allocation13 + $0x44] sm:$0xf]
    %v2280 = vld [vmem:[#allocation13 + $0x48] sm:$0xf]
    %v2281 = vld [vmem:[#allocation13 + $0x4c] sm:$0xf]
    %v2282 = vld [vmem:[#allocation13 + $0x50] sm:$0xf]
    %v2283 = vld [vmem:[#allocation13 + $0x54] sm:$0xf]
    %v2284 = vld [vmem:[#allocation13 + $0x58] sm:$0xf]
    %v2285 = vld [vmem:[#allocation13 + $0x5c] sm:$0xf]
    %v2286 = vld [vmem:[#allocation13 + $0x60] sm:$0xf]
    %v2287 = vld [vmem:[#allocation13 + $0x64] sm:$0xf]
    %v2288 = vld [vmem:[#allocation13 + $0x68] sm:$0xf]
    %v2289 = vld [vmem:[#allocation13 + $0x6c] sm:$0xf]
    %v2290 = vld [vmem:[#allocation13 + $0x70] sm:$0xf]
    %v2291 = vld [vmem:[#allocation13 + $0x74] sm:$0xf]
    %v2292 = vld [vmem:[#allocation13 + $0x78] sm:$0xf]
    %v2293 = vld [vmem:[#allocation13 + $0x7c] sm:$0xf]
    %v2294 = vld [vmem:[#allocation13 + $0x80] sm:$0xf]
    %v2295 = vld [vmem:[#allocation13 + $0x84] sm:$0xf]
    %v2296 = vld [vmem:[#allocation13 + $0x88] sm:$0xf]
    %v2297 = vld [vmem:[#allocation13 + $0x8c] sm:$0xf]
    %v2298 = vld [vmem:[#allocation13 + $0x90] sm:$0xf]
    %v2299 = vld [vmem:[#allocation13 + $0x94] sm:$0xf]
    %v2300 = vld [vmem:[#allocation13 + $0x98] sm:$0xf]
    %v2301 = vld [vmem:[#allocation13 + $0x9c] sm:$0xf]
    %v2302 = vld [vmem:[#allocation13 + $0xa0] sm:$0xf]
    %v2303 = vld [vmem:[#allocation13 + $0xa4] sm:$0xf]
    %v2304 = vld [vmem:[#allocation13 + $0xa8] sm:$0xf]
    %v2305 = vld [vmem:[#allocation13 + $0xac] sm:$0xf]
    %v2306 = vld [vmem:[#allocation13 + $0xb0] sm:$0xf]
    %v2307 = vld [vmem:[#allocation13 + $0xb4] sm:$0xf]
    %v2308 = vld [vmem:[#allocation13 + $0xb8] sm:$0xf]
    %v2309 = vld [vmem:[#allocation13 + $0xbc] sm:$0xf]
    %v2310 = vld [vmem:[#allocation13 + $0xc0] sm:$0xf]
    %v2311 = vld [vmem:[#allocation13 + $0xc4] sm:$0xf]
    %v2312 = vld [vmem:[#allocation13 + $0xc8] sm:$0xf]
    %v2313 = vld [vmem:[#allocation13 + $0xcc] sm:$0xf]
    %v2314 = vld [vmem:[#allocation13 + $0xd0] sm:$0xf]
    %v2315 = vld [vmem:[#allocation13 + $0xd4] sm:$0xf]
    %v2316 = vld [vmem:[#allocation13 + $0xd8] sm:$0xf]
    %v2317 = vld [vmem:[#allocation13 + $0xdc] sm:$0xf]
    %v2318 = vld [vmem:[#allocation13 + $0xe0] sm:$0xf]
    %v2319 = vld [vmem:[#allocation13 + $0xe4] sm:$0xf]
    %v2320 = vld [vmem:[#allocation13 + $0xe8] sm:$0xf]
    %v2321 = vld [vmem:[#allocation13 + $0xec] sm:$0xf]
    %v2322 = vld [vmem:[#allocation13 + $0xf0] sm:$0xf]
    %v2323 = vld [vmem:[#allocation13 + $0xf4] sm:$0xf]
    %v2324 = vld [vmem:[#allocation13 + $0xf8] sm:$0xf]
    %v2325 = vld [vmem:[#allocation13 + $0xfc] sm:$0xf]
    %v2326 = vld [vmem:[%s8] sm:$0x1]
    %v2328 = vperm.slane %v2326, 0
    %v2394 = vunpack.c.l.b16 %v2262
    %v2395 = vunpack.c.l.b16 %v2263
    %v2396 = vunpack.c.l.b16 %v2264
    %v2397 = vunpack.c.l.b16 %v2265
    %v2398 = vunpack.c.l.b16 %v2266
    %v2399 = vunpack.c.l.b16 %v2267
    %v2400 = vunpack.c.l.b16 %v2268
    %v2401 = vunpack.c.l.b16 %v2269
    %v2402 = vunpack.c.l.b16 %v2270
    %v2403 = vunpack.c.l.b16 %v2271
    %v2404 = vunpack.c.l.b16 %v2272
    %v2405 = vunpack.c.l.b16 %v2273
    %v2406 = vunpack.c.l.b16 %v2274
    %v2407 = vunpack.c.l.b16 %v2275
    %v2408 = vunpack.c.l.b16 %v2276
    %v2409 = vunpack.c.l.b16 %v2277
    %v2410 = vunpack.c.l.b16 %v2278
    %v2411 = vunpack.c.l.b16 %v2279
    %v2412 = vunpack.c.l.b16 %v2280
    %v2413 = vunpack.c.l.b16 %v2281
    %v2414 = vunpack.c.l.b16 %v2282
    %v2415 = vunpack.c.l.b16 %v2283
    %v2416 = vunpack.c.l.b16 %v2284
    %v2417 = vunpack.c.l.b16 %v2285
    %v2418 = vunpack.c.l.b16 %v2286
    %v2419 = vunpack.c.l.b16 %v2287
    %v2420 = vunpack.c.l.b16 %v2288
    %v2421 = vunpack.c.l.b16 %v2289
    %v2422 = vunpack.c.l.b16 %v2290
    %v2423 = vunpack.c.l.b16 %v2291
    %v2424 = vunpack.c.l.b16 %v2292
    %v2425 = vunpack.c.l.b16 %v2293
    %v2426 = vunpack.c.l.b16 %v2294
    %v2427 = vunpack.c.l.b16 %v2295
    %v2428 = vunpack.c.l.b16 %v2296
    %v2429 = vunpack.c.l.b16 %v2297
    %v2430 = vunpack.c.l.b16 %v2298
    %v2431 = vunpack.c.l.b16 %v2299
    %v2432 = vunpack.c.l.b16 %v2300
    %v2433 = vunpack.c.l.b16 %v2301
    %v2434 = vunpack.c.l.b16 %v2302
    %v2435 = vunpack.c.l.b16 %v2303
    %v2436 = vunpack.c.l.b16 %v2304
    %v2437 = vunpack.c.l.b16 %v2305
    %v2438 = vunpack.c.l.b16 %v2306
    %v2439 = vunpack.c.l.b16 %v2307
    %v2440 = vunpack.c.l.b16 %v2308
    %v2441 = vunpack.c.l.b16 %v2309
    %v2442 = vunpack.c.l.b16 %v2310
    %v2443 = vunpack.c.l.b16 %v2311
    %v2444 = vunpack.c.l.b16 %v2312
    %v2445 = vunpack.c.l.b16 %v2313
    %v2446 = vunpack.c.l.b16 %v2314
    %v2447 = vunpack.c.l.b16 %v2315
    %v2448 = vunpack.c.l.b16 %v2316
    %v2449 = vunpack.c.l.b16 %v2317
    %v2450 = vunpack.c.l.b16 %v2318
    %v2451 = vunpack.c.l.b16 %v2319
    %v2452 = vunpack.c.l.b16 %v2320
    %v2453 = vunpack.c.l.b16 %v2321
    %v2454 = vunpack.c.l.b16 %v2322
    %v2455 = vunpack.c.l.b16 %v2323
    %v2456 = vunpack.c.l.b16 %v2324
    %v2457 = vunpack.c.l.b16 %v2325
    %v2458 = vpack.c.b16 %v2395, %v2394
    %v2459 = vpack.c.b16 %v2397, %v2396
    %v2460 = vpack.c.b16 %v2399, %v2398
    %v2461 = vpack.c.b16 %v2401, %v2400
    %v2462 = vpack.c.b16 %v2403, %v2402
    %v2463 = vpack.c.b16 %v2405, %v2404
    %v2464 = vpack.c.b16 %v2407, %v2406
    %v2465 = vpack.c.b16 %v2409, %v2408
    %v2466 = vpack.c.b16 %v2411, %v2410
    %v2467 = vpack.c.b16 %v2413, %v2412
    %v2468 = vpack.c.b16 %v2415, %v2414
    %v2469 = vpack.c.b16 %v2417, %v2416
    %v2470 = vpack.c.b16 %v2419, %v2418
    %v2471 = vpack.c.b16 %v2421, %v2420
    %v2472 = vpack.c.b16 %v2423, %v2422
    %v2473 = vpack.c.b16 %v2425, %v2424
    %v2474 = vpack.c.b16 %v2427, %v2426
    %v2475 = vpack.c.b16 %v2429, %v2428
    %v2476 = vpack.c.b16 %v2431, %v2430
    %v2477 = vpack.c.b16 %v2433, %v2432
    %v2478 = vpack.c.b16 %v2435, %v2434
    %v2479 = vpack.c.b16 %v2437, %v2436
    %v2480 = vpack.c.b16 %v2439, %v2438
    %v2481 = vpack.c.b16 %v2441, %v2440
    %v2482 = vpack.c.b16 %v2443, %v2442
    %v2483 = vpack.c.b16 %v2445, %v2444
    %v2484 = vpack.c.b16 %v2447, %v2446
    %v2485 = vpack.c.b16 %v2449, %v2448
    %v2486 = vpack.c.b16 %v2451, %v2450
    %v2487 = vpack.c.b16 %v2453, %v2452
    %v2488 = vpack.c.b16 %v2455, %v2454
    %v2489 = vpack.c.b16 %v2457, %v2456
    %2522 = vmatpush.bf16.msra.mxu0 %v2465
    %2523 = vmatpush.bf16.msra.mxu0 %v2464
    %2524 = vmatpush.bf16.msra.mxu0 %v2463
    %2525 = vmatpush.bf16.msra.mxu0 %v2462
    %2526 = vmatpush.bf16.msra.mxu0 %v2461
    %2527 = vmatpush.bf16.msra.mxu0 %v2460
    %2528 = vmatpush.bf16.msra.mxu0 %v2459
    %2529 = vmatpush.bf16.msra.mxu0 %v2458
    %2530 = vmatmul.bf16.gmra.mxu0 %v2258
    %v2531 = vpop.f32.mrf.mxu0
    %v2532 = vadd.f32 %v2328, %v2531
    %v2533 = vpop.f32.mrf.mxu0
    %2534 = vdwg.mxu0
    %2535 = vmatpush.bf16.msra.mxu0 %v2473
    %2536 = vmatpush.bf16.msra.mxu0 %v2472
    %2537 = vmatpush.bf16.msra.mxu0 %v2471
    %2538 = vmatpush.bf16.msra.mxu0 %v2470
    %2539 = vmatpush.bf16.msra.mxu0 %v2469
    %2540 = vmatpush.bf16.msra.mxu0 %v2468
    %2541 = vmatpush.bf16.msra.mxu0 %v2467
    %2542 = vmatpush.bf16.msra.mxu0 %v2466
    %2543 = vmatmul.bf16.gmra.mxu0 %v2259
    %v2544 = vpop.f32.mrf.mxu0
    %v2545 = vadd.f32 %v2532, %v2544
    %v2546 = vpop.f32.mrf.mxu0
    %2547 = vdwg.mxu0
    %2548 = vmatpush.bf16.msra.mxu0 %v2481
    %2549 = vmatpush.bf16.msra.mxu0 %v2480
    %2550 = vmatpush.bf16.msra.mxu0 %v2479
    %2551 = vmatpush.bf16.msra.mxu0 %v2478
    %2552 = vmatpush.bf16.msra.mxu0 %v2477
    %2553 = vmatpush.bf16.msra.mxu0 %v2476
    %2554 = vmatpush.bf16.msra.mxu0 %v2475
    %2555 = vmatpush.bf16.msra.mxu0 %v2474
    %2556 = vmatmul.bf16.gmra.mxu0 %v2260
    %v2557 = vpop.f32.mrf.mxu0
    %v2558 = vadd.f32 %v2545, %v2557
    %v2559 = vpop.f32.mrf.mxu0
    %2560 = vdwg.mxu0
    %2561 = vmatpush.bf16.msra.mxu0 %v2489
    %2562 = vmatpush.bf16.msra.mxu0 %v2488
    %2563 = vmatpush.bf16.msra.mxu0 %v2487
    %2564 = vmatpush.bf16.msra.mxu0 %v2486
    %2565 = vmatpush.bf16.msra.mxu0 %v2485
    %2566 = vmatpush.bf16.msra.mxu0 %v2484
    %2567 = vmatpush.bf16.msra.mxu0 %v2483
    %2568 = vmatpush.bf16.msra.mxu0 %v2482
    %2569 = vmatmul.bf16.gmra.mxu0 %v2261
    %v2570 = vpop.f32.mrf.mxu0
    %v2571 = vadd.f32 %v2558, %v2570
    %v2572 = vpop.f32.mrf.mxu0
    %2573 = vdwg.mxu0
    %2574 = vst [vmem:[%s9] sm:$0xff] %v2571
    // Predicated region
    $region70: #{dqn_forward.1} parent=1 // pred_check
      _
    $region71: #{dqn_forward.1} parent=1 // pred_check_branch
      %2576 = sbr.rel (0) target = $region73
    $region72: #{dqn_forward.1} parent=1 // pred_region
      _
    $region73: #{dqn_forward.1} parent=1 // pred_fallthru
      _
    // Predicated region
    $region74: #{dqn_forward.1} parent=1 // pred_check
      _
    $region75: #{dqn_forward.1} parent=1 // pred_check_branch
      %2578 = sbr.rel (0) target = $region77
    $region76: #{dqn_forward.1} parent=1 // pred_region
      _
    $region77: #{dqn_forward.1} parent=1 // pred_fallthru
      _
    %2579 = vsyncpa [#allocation3], 1
    %2580 = vsyncpa [#allocation5], 1
    %2581 = vsyncpa [#allocation8], 1
    %2582 = vsyncpa [#allocation11], 1
    %2583 = vsyncpa [#allocation14], 1

</llo_original>
